<compile_context>
chip_gen: v6e
topology: v6e:2x2x1
jax: 0.10.0
libtpu: 0.0.40
codegen_flags: <defaults>
</compile_context>

<pallas_src>
import functools

import jax
import jax.numpy as jnp
from jax.experimental import pallas as pl
from jax.experimental.pallas import tpu as pltpu


def _lka_kernel(x_ref, w0_ref, b0_ref, ws_ref, bs_ref, w1_ref, b1_ref,
                out_ref, pad0_ref, pad1_ref, *, C):
    """One batch element per grid step; all convs + the gating fused.

    Shapes (folded layout, WC = W*C):
      x_ref   : (1, H, WC)
      w0_ref  : (5, 5, WC)   depthwise 5x5 weights, tiled over W, col-mask folded in
      ws_ref  : (7, 7, WC)   depthwise 7x7 (dil=3) weights, same folding
      w1_ref  : (2C-1, WC)   1x1-conv lane weights for the shift-MAC decomposition
      b*_ref  : (1, WC)      biases tiled over W
      pad0_ref: (H+4,  WC)   rows-only padded scratch for conv0
      pad1_ref: (H+18, WC)   rows-only padded scratch for conv_spatial
    """
    _, H, WC = x_ref.shape
    f32 = jnp.float32

    # ---- conv0: depthwise 5x5, padding=2 --------------------------------
    # Zero only the halo row strips; write x straight from x_ref.
    pad0_ref[0:2, :] = jnp.zeros((2, WC), f32)
    pad0_ref[2 + H:4 + H, :] = jnp.zeros((2, WC), f32)
    pad0_ref[2:2 + H, :] = x_ref[0].astype(f32)

    w0 = w0_ref[...]
    acc0 = jnp.broadcast_to(b0_ref[0], (H, WC))          # bias-initialized
    for i in range(5):
        rows = pad0_ref[i:i + H, :]                       # row window (reused over j)
        for j in range(5):
            shift = (-(j - 2) * C) % WC                   # W-shift -> lane roll (XLU)
            shifted = pltpu.roll(rows, shift=shift, axis=1) if shift else rows
            acc0 = acc0 + shifted * w0[i, j]

    # ---- conv_spatial: depthwise 7x7, dilation=3, padding=9 --------------
    pad1_ref[0:9, :] = jnp.zeros((9, WC), f32)
    pad1_ref[9 + H:18 + H, :] = jnp.zeros((9, WC), f32)
    pad1_ref[9:9 + H, :] = acc0

    ws = ws_ref[...]
    acc1 = jnp.broadcast_to(bs_ref[0], (H, WC))          # bias-initialized
    for i in range(7):
        rows = pad1_ref[3 * i:3 * i + H, :]
        for j in range(7):
            shift = (-3 * (j - 3) * C) % WC
            shifted = pltpu.roll(rows, shift=shift, axis=1) if shift else rows
            acc1 = acc1 + shifted * ws[i, j]

    # ---- conv1 (1x1 over channels) + gating, fused on the VPU ------------
    # attn[w*C+co] = b1[co] + sum_ci acc1[w*C+ci] * w1[ci, co]
    # decomposed over s = ci - co as lane rolls with masked lane weights.
    w1 = w1_ref[...]
    attn = jnp.broadcast_to(b1_ref[0], (H, WC))          # b1 folded into the accumulator
    for idx in range(2 * C - 1):
        s = idx - (C - 1)
        shift = (-s) % WC
        shifted = pltpu.roll(acc1, shift=shift, axis=1) if shift else acc1
        attn = attn + shifted * w1[idx]

    # Gating re-reads x_ref here (x is not kept live across the whole body).
    out_ref[0] = (x_ref[0].astype(f32) * attn).astype(out_ref.dtype)


def _fold_dw_weights(w, W, dilation, pad):
    """(K, K, C) depthwise weights -> (K, K, W*C), W-tiled with the column
    zero-padding validity mask folded in."""
    K, _, C = w.shape
    cols = jnp.arange(W)
    dcs = dilation * jnp.arange(K) - pad                          # col offset per tap j
    valid = ((cols[None, :] + dcs[:, None] >= 0)
             & (cols[None, :] + dcs[:, None] < W)).astype(w.dtype)  # (K, W)
    wt = w[:, :, None, :] * valid[None, :, :, None]               # (K, K, W, C)
    return wt.reshape(K, K, W * C)


def _fold_pw_weights(w1_io, b1, W):
    """(Cin, Cout) 1x1-conv weights -> (2C-1, W*C) lane weights for the
    lane-shift multiply-add decomposition, plus the W-tiled bias."""
    C = w1_io.shape[0]
    co = jnp.arange(C)
    rows = []
    for s in range(-(C - 1), C):
        ci = co + s
        v = jnp.where((ci >= 0) & (ci < C),
                      w1_io[jnp.clip(ci, 0, C - 1), co], jnp.zeros((), w1_io.dtype))
        rows.append(jnp.tile(v, W))
    return jnp.stack(rows, 0), jnp.tile(b1, W)


def attention_module(x_nchw, w0_t, b0, ws_t, bs, w1_t, b1):
    """PyTorch-layout interface.

    x_nchw: (N, C, H, W); w0_t: (C,1,5,5); ws_t: (C,1,7,7); w1_t: (C,C,1,1);
    biases: (C,). Returns (N, C, H, W).
    """
    N, C, H, W = x_nchw.shape
    WC = W * C

    # NCHW -> lane-dense folded layout (N, H, W*C).
    xf = jnp.transpose(x_nchw, (0, 2, 3, 1)).reshape(N, H, WC)

    w0 = jnp.transpose(w0_t[:, 0], (1, 2, 0))             # (5, 5, C)
    ws = jnp.transpose(ws_t[:, 0], (1, 2, 0))             # (7, 7, C)
    w1 = jnp.transpose(w1_t[:, :, 0, 0], (1, 0))          # (Cin, Cout)

    w0f = _fold_dw_weights(w0, W, dilation=1, pad=2)      # (5, 5, WC)
    wsf = _fold_dw_weights(ws, W, dilation=3, pad=9)      # (7, 7, WC)
    w1f, b1f = _fold_pw_weights(w1, b1, W)                # (2C-1, WC), (WC,)
    b0f = jnp.tile(b0, W)[None]                           # (1, WC)
    bsf = jnp.tile(bs, W)[None]                           # (1, WC)
    b1f = b1f[None]                                       # (1, WC)

    # Explicit VMEM budget with headroom (keeps v7x's 64 MiB in mind).
    est = 4 * (4 * H * WC + (H + 4) * WC + (H + 18) * WC
               + (25 + 49 + 2 * C + 3) * WC)
    vmem_limit = int(min(max(2 * est, 16 * 1024 * 1024), 64 * 1024 * 1024))

    grid_spec = pltpu.PrefetchScalarGridSpec(
        num_scalar_prefetch=0,
        grid=(N,),
        in_specs=[
            pl.BlockSpec((1, H, WC), lambda n: (n, 0, 0)),
            pl.BlockSpec((5, 5, WC), lambda n: (0, 0, 0)),
            pl.BlockSpec((1, WC), lambda n: (0, 0)),
            pl.BlockSpec((7, 7, WC), lambda n: (0, 0, 0)),
            pl.BlockSpec((1, WC), lambda n: (0, 0)),
            pl.BlockSpec((2 * C - 1, WC), lambda n: (0, 0)),
            pl.BlockSpec((1, WC), lambda n: (0, 0)),
        ],
        out_specs=pl.BlockSpec((1, H, WC), lambda n: (n, 0, 0)),
        scratch_shapes=[
            pltpu.VMEM((H + 4, WC), jnp.float32),          # conv0 row-pad scratch
            pltpu.VMEM((H + 18, WC), jnp.float32),         # conv_spatial row-pad scratch
        ],
    )

    out_folded = pl.pallas_call(
        functools.partial(_lka_kernel, C=C),
        out_shape=jax.ShapeDtypeStruct((N, H, WC), x_nchw.dtype),
        grid_spec=grid_spec,
        compiler_params=pltpu.CompilerParams(
            dimension_semantics=("parallel",),
            vmem_limit_bytes=vmem_limit),
    )(xf, w0f, b0f, wsf, bsf, w1f, b1f)

    return jnp.transpose(out_folded.reshape(N, H, W, C), (0, 3, 1, 2))


def reference_nchw(x, w0, b0, ws, bs, w1, b1):
    """Pure-JAX reference replicating the PyTorch module exactly (NCHW)."""
    def dwconv(inp, w, b, dilation, padding):
        y = jax.lax.conv_general_dilated(
            inp, w, window_strides=(1, 1),
            padding=[(padding, padding), (padding, padding)],
            rhs_dilation=(dilation, dilation),
            dimension_numbers=('NCHW', 'OIHW', 'NCHW'),
            feature_group_count=inp.shape[1])
        return y + b[None, :, None, None]

    attn = dwconv(x, w0, b0, 1, 2)
    attn = dwconv(attn, ws, bs, 3, 9)
    attn = jax.lax.conv_general_dilated(
        attn, w1, (1, 1), [(0, 0), (0, 0)],
        dimension_numbers=('NCHW', 'OIHW', 'NCHW')) + b1[None, :, None, None]
    return x * attn


if __name__ == "__main__":
    dim, N, H, W = 4, 2, 16, 16
    key = jax.random.PRNGKey(0)
    ks = jax.random.split(key, 7)

    # Deterministic synthetic parameters, in PyTorch layouts.
    x_nchw = jax.random.normal(ks[0], (N, dim, H, W), jnp.float32)
    w0_t = jax.random.normal(ks[1], (dim, 1, 5, 5), jnp.float32) * 0.1   # conv0 weight
    b0 = jax.random.normal(ks[2], (dim,), jnp.float32) * 0.1             # conv0 bias
    ws_t = jax.random.normal(ks[3], (dim, 1, 7, 7), jnp.float32) * 0.1   # conv_spatial weight
    bs = jax.random.normal(ks[4], (dim,), jnp.float32) * 0.1             # conv_spatial bias
    w1_t = jax.random.normal(ks[5], (dim, dim, 1, 1), jnp.float32) * 0.1 # conv1 weight
    b1 = jax.random.normal(ks[6], (dim,), jnp.float32) * 0.1             # conv1 bias

    out = attention_module(x_nchw, w0_t, b0, ws_t, bs, w1_t, b1)
    out = jax.block_until_ready(out)

    ref = reference_nchw(x_nchw, w0_t, b0, ws_t, bs, w1_t, b1)
    max_err = float(jnp.max(jnp.abs(out - ref)))
    assert jnp.allclose(out, ref, rtol=1e-4, atol=1e-4), f"max_err={max_err}"
    print("KERNEL_OK")
</pallas_src>

<mosaic_0001>
module attributes {stable_mosaic.version = 11 : i64} {
  func.func @_lka_kernel(%arg0: i32, %arg1: memref<1x16x64xf32, #tpu.memory_space<vmem>>, %arg2: memref<5x5x64xf32, #tpu.memory_space<vmem>>, %arg3: memref<1x64xf32, #tpu.memory_space<vmem>>, %arg4: memref<7x7x64xf32, #tpu.memory_space<vmem>>, %arg5: memref<1x64xf32, #tpu.memory_space<vmem>>, %arg6: memref<7x64xf32, #tpu.memory_space<vmem>>, %arg7: memref<1x64xf32, #tpu.memory_space<vmem>>, %arg8: memref<1x16x64xf32, #tpu.memory_space<vmem>>, %arg9: memref<20x64xf32, #tpu.memory_space<vmem>>, %arg10: memref<34x64xf32, #tpu.memory_space<vmem>>) attributes {dimension_semantics = [#tpu.dimension_semantics<parallel>], iteration_bounds = array<i64: 2>, scalar_prefetch = 0 : i64, scratch_operands = 2 : i64, tpu.core_type = #tpu.core_type<tc>, window_params = [{transform_indices = @transform_0, window_bounds = array<i64: 1, 16, 64>}, {pipeline_mode = #tpu.pipeline_mode<synchronous>, transform_indices = @transform_1, window_bounds = array<i64: 5, 5, 64>}, {pipeline_mode = #tpu.pipeline_mode<synchronous>, transform_indices = @transform_2, window_bounds = array<i64: 1, 64>}, {pipeline_mode = #tpu.pipeline_mode<synchronous>, transform_indices = @transform_3, window_bounds = array<i64: 7, 7, 64>}, {pipeline_mode = #tpu.pipeline_mode<synchronous>, transform_indices = @transform_4, window_bounds = array<i64: 1, 64>}, {pipeline_mode = #tpu.pipeline_mode<synchronous>, transform_indices = @transform_5, window_bounds = array<i64: 7, 64>}, {pipeline_mode = #tpu.pipeline_mode<synchronous>, transform_indices = @transform_6, window_bounds = array<i64: 1, 64>}, {transform_indices = @transform_7, window_bounds = array<i64: 1, 16, 64>}]} {
    %cst = arith.constant 0.000000e+00 : f32
    %0 = vector.broadcast %cst : f32 to vector<2x64xf32>
    %c0 = arith.constant 0 : index
    %c0_0 = arith.constant 0 : index
    %1 = vector.load %arg9[%c0, %c0_0] : memref<20x64xf32, #tpu.memory_space<vmem>>, vector<2x64xf32>
    tpu.vector_store %arg9[%c0, %c0_0], %0 {strides = array<i32>} : memref<20x64xf32, #tpu.memory_space<vmem>>, vector<2x64xf32>,
    %cst_1 = arith.constant 0.000000e+00 : f32
    %2 = vector.broadcast %cst_1 : f32 to vector<2x64xf32>
    %c18 = arith.constant 18 : index
    %c0_2 = arith.constant 0 : index
    %3 = vector.load %arg9[%c18, %c0_2] : memref<20x64xf32, #tpu.memory_space<vmem>>, vector<2x64xf32>
    tpu.vector_store %arg9[%c18, %c0_2], %2 {strides = array<i32>} : memref<20x64xf32, #tpu.memory_space<vmem>>, vector<2x64xf32>,
    %c0_3 = arith.constant 0 : index
    %c0_4 = arith.constant 0 : index
    %c0_5 = arith.constant 0 : index
    %4 = vector.load %arg1[%c0_3, %c0_4, %c0_5] : memref<1x16x64xf32, #tpu.memory_space<vmem>>, vector<1x16x64xf32>
    %5 = vector.shape_cast %4 : vector<1x16x64xf32> to vector<16x64xf32>
    %c2 = arith.constant 2 : index
    %c0_6 = arith.constant 0 : index
    %6 = vector.load %arg9[%c2, %c0_6] : memref<20x64xf32, #tpu.memory_space<vmem>>, vector<16x64xf32>
    tpu.vector_store %arg9[%c2, %c0_6], %5 {strides = array<i32>} : memref<20x64xf32, #tpu.memory_space<vmem>>, vector<16x64xf32>,
    %c0_7 = arith.constant 0 : index
    %c0_8 = arith.constant 0 : index
    %c0_9 = arith.constant 0 : index
    %7 = vector.load %arg2[%c0_7, %c0_8, %c0_9] : memref<5x5x64xf32, #tpu.memory_space<vmem>>, vector<5x5x64xf32>
    %c0_10 = arith.constant 0 : index
    %c0_11 = arith.constant 0 : index
    %8 = vector.load %arg3[%c0_10, %c0_11] : memref<1x64xf32, #tpu.memory_space<vmem>>, vector<1x64xf32>
    %9 = vector.shape_cast %8 : vector<1x64xf32> to vector<64xf32>
    %10 = vector.shape_cast %9 : vector<64xf32> to vector<1x64xf32>
    %11 = vector.broadcast %10 : vector<1x64xf32> to vector<16x64xf32>
    %c0_12 = arith.constant 0 : index
    %c0_13 = arith.constant 0 : index
    %12 = vector.load %arg9[%c0_12, %c0_13] : memref<20x64xf32, #tpu.memory_space<vmem>>, vector<16x64xf32>
    %c8_i32 = arith.constant 8 : i32
    %13 = tpu.dynamic_rotate %12 by %c8_i32 dim 1 : vector<16x64xf32>, i32 -> vector<16x64xf32>
    %14 = vector.extract_strided_slice %7 {offsets = [0, 0, 0], sizes = [1, 1, 64], strides = [1, 1, 1]} : vector<5x5x64xf32> to vector<1x1x64xf32>
    %15 = vector.shape_cast %14 : vector<1x1x64xf32> to vector<64xf32>
    %16 = vector.shape_cast %15 : vector<64xf32> to vector<1x64xf32>
    %17 = vector.broadcast %16 : vector<1x64xf32> to vector<16x64xf32>
    %18 = arith.mulf %13, %17 : vector<16x64xf32>
    %19 = arith.addf %11, %18 : vector<16x64xf32>
    %c4_i32 = arith.constant 4 : i32
    %20 = tpu.dynamic_rotate %12 by %c4_i32 dim 1 : vector<16x64xf32>, i32 -> vector<16x64xf32>
    %21 = vector.extract_strided_slice %7 {offsets = [0, 1, 0], sizes = [1, 1, 64], strides = [1, 1, 1]} : vector<5x5x64xf32> to vector<1x1x64xf32>
    %22 = vector.shape_cast %21 : vector<1x1x64xf32> to vector<64xf32>
    %23 = vector.shape_cast %22 : vector<64xf32> to vector<1x64xf32>
    %24 = vector.broadcast %23 : vector<1x64xf32> to vector<16x64xf32>
    %25 = arith.mulf %20, %24 : vector<16x64xf32>
    %26 = arith.addf %19, %25 : vector<16x64xf32>
    %27 = vector.extract_strided_slice %7 {offsets = [0, 2, 0], sizes = [1, 1, 64], strides = [1, 1, 1]} : vector<5x5x64xf32> to vector<1x1x64xf32>
    %28 = vector.shape_cast %27 : vector<1x1x64xf32> to vector<64xf32>
    %29 = vector.shape_cast %28 : vector<64xf32> to vector<1x64xf32>
    %30 = vector.broadcast %29 : vector<1x64xf32> to vector<16x64xf32>
    %31 = arith.mulf %12, %30 : vector<16x64xf32>
    %32 = arith.addf %26, %31 : vector<16x64xf32>
    %c60_i32 = arith.constant 60 : i32
    %33 = tpu.dynamic_rotate %12 by %c60_i32 dim 1 : vector<16x64xf32>, i32 -> vector<16x64xf32>
    %34 = vector.extract_strided_slice %7 {offsets = [0, 3, 0], sizes = [1, 1, 64], strides = [1, 1, 1]} : vector<5x5x64xf32> to vector<1x1x64xf32>
    %35 = vector.shape_cast %34 : vector<1x1x64xf32> to vector<64xf32>
    %36 = vector.shape_cast %35 : vector<64xf32> to vector<1x64xf32>
    %37 = vector.broadcast %36 : vector<1x64xf32> to vector<16x64xf32>
    %38 = arith.mulf %33, %37 : vector<16x64xf32>
    %39 = arith.addf %32, %38 : vector<16x64xf32>
    %c56_i32 = arith.constant 56 : i32
    %40 = tpu.dynamic_rotate %12 by %c56_i32 dim 1 : vector<16x64xf32>, i32 -> vector<16x64xf32>
    %41 = vector.extract_strided_slice %7 {offsets = [0, 4, 0], sizes = [1, 1, 64], strides = [1, 1, 1]} : vector<5x5x64xf32> to vector<1x1x64xf32>
    %42 = vector.shape_cast %41 : vector<1x1x64xf32> to vector<64xf32>
    %43 = vector.shape_cast %42 : vector<64xf32> to vector<1x64xf32>
    %44 = vector.broadcast %43 : vector<1x64xf32> to vector<16x64xf32>
    %45 = arith.mulf %40, %44 : vector<16x64xf32>
    %46 = arith.addf %39, %45 : vector<16x64xf32>
    %c1 = arith.constant 1 : index
    %c0_14 = arith.constant 0 : index
    %47 = vector.load %arg9[%c1, %c0_14] : memref<20x64xf32, #tpu.memory_space<vmem>>, vector<16x64xf32>
    %c8_i32_15 = arith.constant 8 : i32
    %48 = tpu.dynamic_rotate %47 by %c8_i32_15 dim 1 : vector<16x64xf32>, i32 -> vector<16x64xf32>
    %49 = vector.extract_strided_slice %7 {offsets = [1, 0, 0], sizes = [1, 1, 64], strides = [1, 1, 1]} : vector<5x5x64xf32> to vector<1x1x64xf32>
    %50 = vector.shape_cast %49 : vector<1x1x64xf32> to vector<64xf32>
    %51 = vector.shape_cast %50 : vector<64xf32> to vector<1x64xf32>
    %52 = vector.broadcast %51 : vector<1x64xf32> to vector<16x64xf32>
    %53 = arith.mulf %48, %52 : vector<16x64xf32>
    %54 = arith.addf %46, %53 : vector<16x64xf32>
    %c4_i32_16 = arith.constant 4 : i32
    %55 = tpu.dynamic_rotate %47 by %c4_i32_16 dim 1 : vector<16x64xf32>, i32 -> vector<16x64xf32>
    %56 = vector.extract_strided_slice %7 {offsets = [1, 1, 0], sizes = [1, 1, 64], strides = [1, 1, 1]} : vector<5x5x64xf32> to vector<1x1x64xf32>
    %57 = vector.shape_cast %56 : vector<1x1x64xf32> to vector<64xf32>
    %58 = vector.shape_cast %57 : vector<64xf32> to vector<1x64xf32>
    %59 = vector.broadcast %58 : vector<1x64xf32> to vector<16x64xf32>
    %60 = arith.mulf %55, %59 : vector<16x64xf32>
    %61 = arith.addf %54, %60 : vector<16x64xf32>
    %62 = vector.extract_strided_slice %7 {offsets = [1, 2, 0], sizes = [1, 1, 64], strides = [1, 1, 1]} : vector<5x5x64xf32> to vector<1x1x64xf32>
    %63 = vector.shape_cast %62 : vector<1x1x64xf32> to vector<64xf32>
    %64 = vector.shape_cast %63 : vector<64xf32> to vector<1x64xf32>
    %65 = vector.broadcast %64 : vector<1x64xf32> to vector<16x64xf32>
    %66 = arith.mulf %47, %65 : vector<16x64xf32>
    %67 = arith.addf %61, %66 : vector<16x64xf32>
    %c60_i32_17 = arith.constant 60 : i32
    %68 = tpu.dynamic_rotate %47 by %c60_i32_17 dim 1 : vector<16x64xf32>, i32 -> vector<16x64xf32>
    %69 = vector.extract_strided_slice %7 {offsets = [1, 3, 0], sizes = [1, 1, 64], strides = [1, 1, 1]} : vector<5x5x64xf32> to vector<1x1x64xf32>
    %70 = vector.shape_cast %69 : vector<1x1x64xf32> to vector<64xf32>
    %71 = vector.shape_cast %70 : vector<64xf32> to vector<1x64xf32>
    %72 = vector.broadcast %71 : vector<1x64xf32> to vector<16x64xf32>
    %73 = arith.mulf %68, %72 : vector<16x64xf32>
    %74 = arith.addf %67, %73 : vector<16x64xf32>
    %c56_i32_18 = arith.constant 56 : i32
    %75 = tpu.dynamic_rotate %47 by %c56_i32_18 dim 1 : vector<16x64xf32>, i32 -> vector<16x64xf32>
    %76 = vector.extract_strided_slice %7 {offsets = [1, 4, 0], sizes = [1, 1, 64], strides = [1, 1, 1]} : vector<5x5x64xf32> to vector<1x1x64xf32>
    %77 = vector.shape_cast %76 : vector<1x1x64xf32> to vector<64xf32>
    %78 = vector.shape_cast %77 : vector<64xf32> to vector<1x64xf32>
    %79 = vector.broadcast %78 : vector<1x64xf32> to vector<16x64xf32>
    %80 = arith.mulf %75, %79 : vector<16x64xf32>
    %81 = arith.addf %74, %80 : vector<16x64xf32>
    %c2_19 = arith.constant 2 : index
    %c0_20 = arith.constant 0 : index
    %82 = vector.load %arg9[%c2_19, %c0_20] : memref<20x64xf32, #tpu.memory_space<vmem>>, vector<16x64xf32>
    %c8_i32_21 = arith.constant 8 : i32
    %83 = tpu.dynamic_rotate %82 by %c8_i32_21 dim 1 : vector<16x64xf32>, i32 -> vector<16x64xf32>
    %84 = vector.extract_strided_slice %7 {offsets = [2, 0, 0], sizes = [1, 1, 64], strides = [1, 1, 1]} : vector<5x5x64xf32> to vector<1x1x64xf32>
    %85 = vector.shape_cast %84 : vector<1x1x64xf32> to vector<64xf32>
    %86 = vector.shape_cast %85 : vector<64xf32> to vector<1x64xf32>
    %87 = vector.broadcast %86 : vector<1x64xf32> to vector<16x64xf32>
    %88 = arith.mulf %83, %87 : vector<16x64xf32>
    %89 = arith.addf %81, %88 : vector<16x64xf32>
    %c4_i32_22 = arith.constant 4 : i32
    %90 = tpu.dynamic_rotate %82 by %c4_i32_22 dim 1 : vector<16x64xf32>, i32 -> vector<16x64xf32>
    %91 = vector.extract_strided_slice %7 {offsets = [2, 1, 0], sizes = [1, 1, 64], strides = [1, 1, 1]} : vector<5x5x64xf32> to vector<1x1x64xf32>
    %92 = vector.shape_cast %91 : vector<1x1x64xf32> to vector<64xf32>
    %93 = vector.shape_cast %92 : vector<64xf32> to vector<1x64xf32>
    %94 = vector.broadcast %93 : vector<1x64xf32> to vector<16x64xf32>
    %95 = arith.mulf %90, %94 : vector<16x64xf32>
    %96 = arith.addf %89, %95 : vector<16x64xf32>
    %97 = vector.extract_strided_slice %7 {offsets = [2, 2, 0], sizes = [1, 1, 64], strides = [1, 1, 1]} : vector<5x5x64xf32> to vector<1x1x64xf32>
    %98 = vector.shape_cast %97 : vector<1x1x64xf32> to vector<64xf32>
    %99 = vector.shape_cast %98 : vector<64xf32> to vector<1x64xf32>
    %100 = vector.broadcast %99 : vector<1x64xf32> to vector<16x64xf32>
    %101 = arith.mulf %82, %100 : vector<16x64xf32>
    %102 = arith.addf %96, %101 : vector<16x64xf32>
    %c60_i32_23 = arith.constant 60 : i32
    %103 = tpu.dynamic_rotate %82 by %c60_i32_23 dim 1 : vector<16x64xf32>, i32 -> vector<16x64xf32>
    %104 = vector.extract_strided_slice %7 {offsets = [2, 3, 0], sizes = [1, 1, 64], strides = [1, 1, 1]} : vector<5x5x64xf32> to vector<1x1x64xf32>
    %105 = vector.shape_cast %104 : vector<1x1x64xf32> to vector<64xf32>
    %106 = vector.shape_cast %105 : vector<64xf32> to vector<1x64xf32>
    %107 = vector.broadcast %106 : vector<1x64xf32> to vector<16x64xf32>
    %108 = arith.mulf %103, %107 : vector<16x64xf32>
    %109 = arith.addf %102, %108 : vector<16x64xf32>
    %c56_i32_24 = arith.constant 56 : i32
    %110 = tpu.dynamic_rotate %82 by %c56_i32_24 dim 1 : vector<16x64xf32>, i32 -> vector<16x64xf32>
    %111 = vector.extract_strided_slice %7 {offsets = [2, 4, 0], sizes = [1, 1, 64], strides = [1, 1, 1]} : vector<5x5x64xf32> to vector<1x1x64xf32>
    %112 = vector.shape_cast %111 : vector<1x1x64xf32> to vector<64xf32>
    %113 = vector.shape_cast %112 : vector<64xf32> to vector<1x64xf32>
    %114 = vector.broadcast %113 : vector<1x64xf32> to vector<16x64xf32>
    %115 = arith.mulf %110, %114 : vector<16x64xf32>
    %116 = arith.addf %109, %115 : vector<16x64xf32>
    %c3 = arith.constant 3 : index
    %c0_25 = arith.constant 0 : index
    %117 = vector.load %arg9[%c3, %c0_25] : memref<20x64xf32, #tpu.memory_space<vmem>>, vector<16x64xf32>
    %c8_i32_26 = arith.constant 8 : i32
    %118 = tpu.dynamic_rotate %117 by %c8_i32_26 dim 1 : vector<16x64xf32>, i32 -> vector<16x64xf32>
    %119 = vector.extract_strided_slice %7 {offsets = [3, 0, 0], sizes = [1, 1, 64], strides = [1, 1, 1]} : vector<5x5x64xf32> to vector<1x1x64xf32>
    %120 = vector.shape_cast %119 : vector<1x1x64xf32> to vector<64xf32>
    %121 = vector.shape_cast %120 : vector<64xf32> to vector<1x64xf32>
    %122 = vector.broadcast %121 : vector<1x64xf32> to vector<16x64xf32>
    %123 = arith.mulf %118, %122 : vector<16x64xf32>
    %124 = arith.addf %116, %123 : vector<16x64xf32>
    %c4_i32_27 = arith.constant 4 : i32
    %125 = tpu.dynamic_rotate %117 by %c4_i32_27 dim 1 : vector<16x64xf32>, i32 -> vector<16x64xf32>
    %126 = vector.extract_strided_slice %7 {offsets = [3, 1, 0], sizes = [1, 1, 64], strides = [1, 1, 1]} : vector<5x5x64xf32> to vector<1x1x64xf32>
    %127 = vector.shape_cast %126 : vector<1x1x64xf32> to vector<64xf32>
    %128 = vector.shape_cast %127 : vector<64xf32> to vector<1x64xf32>
    %129 = vector.broadcast %128 : vector<1x64xf32> to vector<16x64xf32>
    %130 = arith.mulf %125, %129 : vector<16x64xf32>
    %131 = arith.addf %124, %130 : vector<16x64xf32>
    %132 = vector.extract_strided_slice %7 {offsets = [3, 2, 0], sizes = [1, 1, 64], strides = [1, 1, 1]} : vector<5x5x64xf32> to vector<1x1x64xf32>
    %133 = vector.shape_cast %132 : vector<1x1x64xf32> to vector<64xf32>
    %134 = vector.shape_cast %133 : vector<64xf32> to vector<1x64xf32>
    %135 = vector.broadcast %134 : vector<1x64xf32> to vector<16x64xf32>
    %136 = arith.mulf %117, %135 : vector<16x64xf32>
    %137 = arith.addf %131, %136 : vector<16x64xf32>
    %c60_i32_28 = arith.constant 60 : i32
    %138 = tpu.dynamic_rotate %117 by %c60_i32_28 dim 1 : vector<16x64xf32>, i32 -> vector<16x64xf32>
    %139 = vector.extract_strided_slice %7 {offsets = [3, 3, 0], sizes = [1, 1, 64], strides = [1, 1, 1]} : vector<5x5x64xf32> to vector<1x1x64xf32>
    %140 = vector.shape_cast %139 : vector<1x1x64xf32> to vector<64xf32>
    %141 = vector.shape_cast %140 : vector<64xf32> to vector<1x64xf32>
    %142 = vector.broadcast %141 : vector<1x64xf32> to vector<16x64xf32>
    %143 = arith.mulf %138, %142 : vector<16x64xf32>
    %144 = arith.addf %137, %143 : vector<16x64xf32>
    %c56_i32_29 = arith.constant 56 : i32
    %145 = tpu.dynamic_rotate %117 by %c56_i32_29 dim 1 : vector<16x64xf32>, i32 -> vector<16x64xf32>
    %146 = vector.extract_strided_slice %7 {offsets = [3, 4, 0], sizes = [1, 1, 64], strides = [1, 1, 1]} : vector<5x5x64xf32> to vector<1x1x64xf32>
    %147 = vector.shape_cast %146 : vector<1x1x64xf32> to vector<64xf32>
    %148 = vector.shape_cast %147 : vector<64xf32> to vector<1x64xf32>
    %149 = vector.broadcast %148 : vector<1x64xf32> to vector<16x64xf32>
    %150 = arith.mulf %145, %149 : vector<16x64xf32>
    %151 = arith.addf %144, %150 : vector<16x64xf32>
    %c4 = arith.constant 4 : index
    %c0_30 = arith.constant 0 : index
    %152 = vector.load %arg9[%c4, %c0_30] : memref<20x64xf32, #tpu.memory_space<vmem>>, vector<16x64xf32>
    %c8_i32_31 = arith.constant 8 : i32
    %153 = tpu.dynamic_rotate %152 by %c8_i32_31 dim 1 : vector<16x64xf32>, i32 -> vector<16x64xf32>
    %154 = vector.extract_strided_slice %7 {offsets = [4, 0, 0], sizes = [1, 1, 64], strides = [1, 1, 1]} : vector<5x5x64xf32> to vector<1x1x64xf32>
    %155 = vector.shape_cast %154 : vector<1x1x64xf32> to vector<64xf32>
    %156 = vector.shape_cast %155 : vector<64xf32> to vector<1x64xf32>
    %157 = vector.broadcast %156 : vector<1x64xf32> to vector<16x64xf32>
    %158 = arith.mulf %153, %157 : vector<16x64xf32>
    %159 = arith.addf %151, %158 : vector<16x64xf32>
    %c4_i32_32 = arith.constant 4 : i32
    %160 = tpu.dynamic_rotate %152 by %c4_i32_32 dim 1 : vector<16x64xf32>, i32 -> vector<16x64xf32>
    %161 = vector.extract_strided_slice %7 {offsets = [4, 1, 0], sizes = [1, 1, 64], strides = [1, 1, 1]} : vector<5x5x64xf32> to vector<1x1x64xf32>
    %162 = vector.shape_cast %161 : vector<1x1x64xf32> to vector<64xf32>
    %163 = vector.shape_cast %162 : vector<64xf32> to vector<1x64xf32>
    %164 = vector.broadcast %163 : vector<1x64xf32> to vector<16x64xf32>
    %165 = arith.mulf %160, %164 : vector<16x64xf32>
    %166 = arith.addf %159, %165 : vector<16x64xf32>
    %167 = vector.extract_strided_slice %7 {offsets = [4, 2, 0], sizes = [1, 1, 64], strides = [1, 1, 1]} : vector<5x5x64xf32> to vector<1x1x64xf32>
    %168 = vector.shape_cast %167 : vector<1x1x64xf32> to vector<64xf32>
    %169 = vector.shape_cast %168 : vector<64xf32> to vector<1x64xf32>
    %170 = vector.broadcast %169 : vector<1x64xf32> to vector<16x64xf32>
    %171 = arith.mulf %152, %170 : vector<16x64xf32>
    %172 = arith.addf %166, %171 : vector<16x64xf32>
    %c60_i32_33 = arith.constant 60 : i32
    %173 = tpu.dynamic_rotate %152 by %c60_i32_33 dim 1 : vector<16x64xf32>, i32 -> vector<16x64xf32>
    %174 = vector.extract_strided_slice %7 {offsets = [4, 3, 0], sizes = [1, 1, 64], strides = [1, 1, 1]} : vector<5x5x64xf32> to vector<1x1x64xf32>
    %175 = vector.shape_cast %174 : vector<1x1x64xf32> to vector<64xf32>
    %176 = vector.shape_cast %175 : vector<64xf32> to vector<1x64xf32>
    %177 = vector.broadcast %176 : vector<1x64xf32> to vector<16x64xf32>
    %178 = arith.mulf %173, %177 : vector<16x64xf32>
    %179 = arith.addf %172, %178 : vector<16x64xf32>
    %c56_i32_34 = arith.constant 56 : i32
    %180 = tpu.dynamic_rotate %152 by %c56_i32_34 dim 1 : vector<16x64xf32>, i32 -> vector<16x64xf32>
    %181 = vector.extract_strided_slice %7 {offsets = [4, 4, 0], sizes = [1, 1, 64], strides = [1, 1, 1]} : vector<5x5x64xf32> to vector<1x1x64xf32>
    %182 = vector.shape_cast %181 : vector<1x1x64xf32> to vector<64xf32>
    %183 = vector.shape_cast %182 : vector<64xf32> to vector<1x64xf32>
    %184 = vector.broadcast %183 : vector<1x64xf32> to vector<16x64xf32>
    %185 = arith.mulf %180, %184 : vector<16x64xf32>
    %186 = arith.addf %179, %185 : vector<16x64xf32>
    %cst_35 = arith.constant 0.000000e+00 : f32
    %187 = vector.broadcast %cst_35 : f32 to vector<9x64xf32>
    %c0_36 = arith.constant 0 : index
    %c0_37 = arith.constant 0 : index
    %188 = vector.load %arg10[%c0_36, %c0_37] : memref<34x64xf32, #tpu.memory_space<vmem>>, vector<9x64xf32>
    tpu.vector_store %arg10[%c0_36, %c0_37], %187 {strides = array<i32>} : memref<34x64xf32, #tpu.memory_space<vmem>>, vector<9x64xf32>,
    %cst_38 = arith.constant 0.000000e+00 : f32
    %189 = vector.broadcast %cst_38 : f32 to vector<9x64xf32>
    %c25 = arith.constant 25 : index
    %c0_39 = arith.constant 0 : index
    %190 = vector.load %arg10[%c25, %c0_39] : memref<34x64xf32, #tpu.memory_space<vmem>>, vector<9x64xf32>
    tpu.vector_store %arg10[%c25, %c0_39], %189 {strides = array<i32>} : memref<34x64xf32, #tpu.memory_space<vmem>>, vector<9x64xf32>,
    %c9 = arith.constant 9 : index
    %c0_40 = arith.constant 0 : index
    %191 = vector.load %arg10[%c9, %c0_40] : memref<34x64xf32, #tpu.memory_space<vmem>>, vector<16x64xf32>
    tpu.vector_store %arg10[%c9, %c0_40], %186 {strides = array<i32>} : memref<34x64xf32, #tpu.memory_space<vmem>>, vector<16x64xf32>,
    %c0_41 = arith.constant 0 : index
    %c0_42 = arith.constant 0 : index
    %c0_43 = arith.constant 0 : index
    %192 = vector.load %arg4[%c0_41, %c0_42, %c0_43] : memref<7x7x64xf32, #tpu.memory_space<vmem>>, vector<7x7x64xf32>
    %c0_44 = arith.constant 0 : index
    %c0_45 = arith.constant 0 : index
    %193 = vector.load %arg5[%c0_44, %c0_45] : memref<1x64xf32, #tpu.memory_space<vmem>>, vector<1x64xf32>
    %194 = vector.shape_cast %193 : vector<1x64xf32> to vector<64xf32>
    %195 = vector.shape_cast %194 : vector<64xf32> to vector<1x64xf32>
    %196 = vector.broadcast %195 : vector<1x64xf32> to vector<16x64xf32>
    %c0_46 = arith.constant 0 : index
    %c0_47 = arith.constant 0 : index
    %197 = vector.load %arg10[%c0_46, %c0_47] : memref<34x64xf32, #tpu.memory_space<vmem>>, vector<16x64xf32>
    %c36_i32 = arith.constant 36 : i32
    %198 = tpu.dynamic_rotate %197 by %c36_i32 dim 1 : vector<16x64xf32>, i32 -> vector<16x64xf32>
    %199 = vector.extract_strided_slice %192 {offsets = [0, 0, 0], sizes = [1, 1, 64], strides = [1, 1, 1]} : vector<7x7x64xf32> to vector<1x1x64xf32>
    %200 = vector.shape_cast %199 : vector<1x1x64xf32> to vector<64xf32>
    %201 = vector.shape_cast %200 : vector<64xf32> to vector<1x64xf32>
    %202 = vector.broadcast %201 : vector<1x64xf32> to vector<16x64xf32>
    %203 = arith.mulf %198, %202 : vector<16x64xf32>
    %204 = arith.addf %196, %203 : vector<16x64xf32>
    %c24_i32 = arith.constant 24 : i32
    %205 = tpu.dynamic_rotate %197 by %c24_i32 dim 1 : vector<16x64xf32>, i32 -> vector<16x64xf32>
    %206 = vector.extract_strided_slice %192 {offsets = [0, 1, 0], sizes = [1, 1, 64], strides = [1, 1, 1]} : vector<7x7x64xf32> to vector<1x1x64xf32>
    %207 = vector.shape_cast %206 : vector<1x1x64xf32> to vector<64xf32>
    %208 = vector.shape_cast %207 : vector<64xf32> to vector<1x64xf32>
    %209 = vector.broadcast %208 : vector<1x64xf32> to vector<16x64xf32>
    %210 = arith.mulf %205, %209 : vector<16x64xf32>
    %211 = arith.addf %204, %210 : vector<16x64xf32>
    %c12_i32 = arith.constant 12 : i32
    %212 = tpu.dynamic_rotate %197 by %c12_i32 dim 1 : vector<16x64xf32>, i32 -> vector<16x64xf32>
    %213 = vector.extract_strided_slice %192 {offsets = [0, 2, 0], sizes = [1, 1, 64], strides = [1, 1, 1]} : vector<7x7x64xf32> to vector<1x1x64xf32>
    %214 = vector.shape_cast %213 : vector<1x1x64xf32> to vector<64xf32>
    %215 = vector.shape_cast %214 : vector<64xf32> to vector<1x64xf32>
    %216 = vector.broadcast %215 : vector<1x64xf32> to vector<16x64xf32>
    %217 = arith.mulf %212, %216 : vector<16x64xf32>
    %218 = arith.addf %211, %217 : vector<16x64xf32>
    %219 = vector.extract_strided_slice %192 {offsets = [0, 3, 0], sizes = [1, 1, 64], strides = [1, 1, 1]} : vector<7x7x64xf32> to vector<1x1x64xf32>
    %220 = vector.shape_cast %219 : vector<1x1x64xf32> to vector<64xf32>
    %221 = vector.shape_cast %220 : vector<64xf32> to vector<1x64xf32>
    %222 = vector.broadcast %221 : vector<1x64xf32> to vector<16x64xf32>
    %223 = arith.mulf %197, %222 : vector<16x64xf32>
    %224 = arith.addf %218, %223 : vector<16x64xf32>
    %c52_i32 = arith.constant 52 : i32
    %225 = tpu.dynamic_rotate %197 by %c52_i32 dim 1 : vector<16x64xf32>, i32 -> vector<16x64xf32>
    %226 = vector.extract_strided_slice %192 {offsets = [0, 4, 0], sizes = [1, 1, 64], strides = [1, 1, 1]} : vector<7x7x64xf32> to vector<1x1x64xf32>
    %227 = vector.shape_cast %226 : vector<1x1x64xf32> to vector<64xf32>
    %228 = vector.shape_cast %227 : vector<64xf32> to vector<1x64xf32>
    %229 = vector.broadcast %228 : vector<1x64xf32> to vector<16x64xf32>
    %230 = arith.mulf %225, %229 : vector<16x64xf32>
    %231 = arith.addf %224, %230 : vector<16x64xf32>
    %c40_i32 = arith.constant 40 : i32
    %232 = tpu.dynamic_rotate %197 by %c40_i32 dim 1 : vector<16x64xf32>, i32 -> vector<16x64xf32>
    %233 = vector.extract_strided_slice %192 {offsets = [0, 5, 0], sizes = [1, 1, 64], strides = [1, 1, 1]} : vector<7x7x64xf32> to vector<1x1x64xf32>
    %234 = vector.shape_cast %233 : vector<1x1x64xf32> to vector<64xf32>
    %235 = vector.shape_cast %234 : vector<64xf32> to vector<1x64xf32>
    %236 = vector.broadcast %235 : vector<1x64xf32> to vector<16x64xf32>
    %237 = arith.mulf %232, %236 : vector<16x64xf32>
    %238 = arith.addf %231, %237 : vector<16x64xf32>
    %c28_i32 = arith.constant 28 : i32
    %239 = tpu.dynamic_rotate %197 by %c28_i32 dim 1 : vector<16x64xf32>, i32 -> vector<16x64xf32>
    %240 = vector.extract_strided_slice %192 {offsets = [0, 6, 0], sizes = [1, 1, 64], strides = [1, 1, 1]} : vector<7x7x64xf32> to vector<1x1x64xf32>
    %241 = vector.shape_cast %240 : vector<1x1x64xf32> to vector<64xf32>
    %242 = vector.shape_cast %241 : vector<64xf32> to vector<1x64xf32>
    %243 = vector.broadcast %242 : vector<1x64xf32> to vector<16x64xf32>
    %244 = arith.mulf %239, %243 : vector<16x64xf32>
    %245 = arith.addf %238, %244 : vector<16x64xf32>
    %c3_48 = arith.constant 3 : index
    %c0_49 = arith.constant 0 : index
    %246 = vector.load %arg10[%c3_48, %c0_49] : memref<34x64xf32, #tpu.memory_space<vmem>>, vector<16x64xf32>
    %c36_i32_50 = arith.constant 36 : i32
    %247 = tpu.dynamic_rotate %246 by %c36_i32_50 dim 1 : vector<16x64xf32>, i32 -> vector<16x64xf32>
    %248 = vector.extract_strided_slice %192 {offsets = [1, 0, 0], sizes = [1, 1, 64], strides = [1, 1, 1]} : vector<7x7x64xf32> to vector<1x1x64xf32>
    %249 = vector.shape_cast %248 : vector<1x1x64xf32> to vector<64xf32>
    %250 = vector.shape_cast %249 : vector<64xf32> to vector<1x64xf32>
    %251 = vector.broadcast %250 : vector<1x64xf32> to vector<16x64xf32>
    %252 = arith.mulf %247, %251 : vector<16x64xf32>
    %253 = arith.addf %245, %252 : vector<16x64xf32>
    %c24_i32_51 = arith.constant 24 : i32
    %254 = tpu.dynamic_rotate %246 by %c24_i32_51 dim 1 : vector<16x64xf32>, i32 -> vector<16x64xf32>
    %255 = vector.extract_strided_slice %192 {offsets = [1, 1, 0], sizes = [1, 1, 64], strides = [1, 1, 1]} : vector<7x7x64xf32> to vector<1x1x64xf32>
    %256 = vector.shape_cast %255 : vector<1x1x64xf32> to vector<64xf32>
    %257 = vector.shape_cast %256 : vector<64xf32> to vector<1x64xf32>
    %258 = vector.broadcast %257 : vector<1x64xf32> to vector<16x64xf32>
    %259 = arith.mulf %254, %258 : vector<16x64xf32>
    %260 = arith.addf %253, %259 : vector<16x64xf32>
    %c12_i32_52 = arith.constant 12 : i32
    %261 = tpu.dynamic_rotate %246 by %c12_i32_52 dim 1 : vector<16x64xf32>, i32 -> vector<16x64xf32>
    %262 = vector.extract_strided_slice %192 {offsets = [1, 2, 0], sizes = [1, 1, 64], strides = [1, 1, 1]} : vector<7x7x64xf32> to vector<1x1x64xf32>
    %263 = vector.shape_cast %262 : vector<1x1x64xf32> to vector<64xf32>
    %264 = vector.shape_cast %263 : vector<64xf32> to vector<1x64xf32>
    %265 = vector.broadcast %264 : vector<1x64xf32> to vector<16x64xf32>
    %266 = arith.mulf %261, %265 : vector<16x64xf32>
    %267 = arith.addf %260, %266 : vector<16x64xf32>
    %268 = vector.extract_strided_slice %192 {offsets = [1, 3, 0], sizes = [1, 1, 64], strides = [1, 1, 1]} : vector<7x7x64xf32> to vector<1x1x64xf32>
    %269 = vector.shape_cast %268 : vector<1x1x64xf32> to vector<64xf32>
    %270 = vector.shape_cast %269 : vector<64xf32> to vector<1x64xf32>
    %271 = vector.broadcast %270 : vector<1x64xf32> to vector<16x64xf32>
    %272 = arith.mulf %246, %271 : vector<16x64xf32>
    %273 = arith.addf %267, %272 : vector<16x64xf32>
    %c52_i32_53 = arith.constant 52 : i32
    %274 = tpu.dynamic_rotate %246 by %c52_i32_53 dim 1 : vector<16x64xf32>, i32 -> vector<16x64xf32>
    %275 = vector.extract_strided_slice %192 {offsets = [1, 4, 0], sizes = [1, 1, 64], strides = [1, 1, 1]} : vector<7x7x64xf32> to vector<1x1x64xf32>
    %276 = vector.shape_cast %275 : vector<1x1x64xf32> to vector<64xf32>
    %277 = vector.shape_cast %276 : vector<64xf32> to vector<1x64xf32>
    %278 = vector.broadcast %277 : vector<1x64xf32> to vector<16x64xf32>
    %279 = arith.mulf %274, %278 : vector<16x64xf32>
    %280 = arith.addf %273, %279 : vector<16x64xf32>
    %c40_i32_54 = arith.constant 40 : i32
    %281 = tpu.dynamic_rotate %246 by %c40_i32_54 dim 1 : vector<16x64xf32>, i32 -> vector<16x64xf32>
    %282 = vector.extract_strided_slice %192 {offsets = [1, 5, 0], sizes = [1, 1, 64], strides = [1, 1, 1]} : vector<7x7x64xf32> to vector<1x1x64xf32>
    %283 = vector.shape_cast %282 : vector<1x1x64xf32> to vector<64xf32>
    %284 = vector.shape_cast %283 : vector<64xf32> to vector<1x64xf32>
    %285 = vector.broadcast %284 : vector<1x64xf32> to vector<16x64xf32>
    %286 = arith.mulf %281, %285 : vector<16x64xf32>
    %287 = arith.addf %280, %286 : vector<16x64xf32>
    %c28_i32_55 = arith.constant 28 : i32
    %288 = tpu.dynamic_rotate %246 by %c28_i32_55 dim 1 : vector<16x64xf32>, i32 -> vector<16x64xf32>
    %289 = vector.extract_strided_slice %192 {offsets = [1, 6, 0], sizes = [1, 1, 64], strides = [1, 1, 1]} : vector<7x7x64xf32> to vector<1x1x64xf32>
    %290 = vector.shape_cast %289 : vector<1x1x64xf32> to vector<64xf32>
    %291 = vector.shape_cast %290 : vector<64xf32> to vector<1x64xf32>
    %292 = vector.broadcast %291 : vector<1x64xf32> to vector<16x64xf32>
    %293 = arith.mulf %288, %292 : vector<16x64xf32>
    %294 = arith.addf %287, %293 : vector<16x64xf32>
    %c6 = arith.constant 6 : index
    %c0_56 = arith.constant 0 : index
    %295 = vector.load %arg10[%c6, %c0_56] : memref<34x64xf32, #tpu.memory_space<vmem>>, vector<16x64xf32>
    %c36_i32_57 = arith.constant 36 : i32
    %296 = tpu.dynamic_rotate %295 by %c36_i32_57 dim 1 : vector<16x64xf32>, i32 -> vector<16x64xf32>
    %297 = vector.extract_strided_slice %192 {offsets = [2, 0, 0], sizes = [1, 1, 64], strides = [1, 1, 1]} : vector<7x7x64xf32> to vector<1x1x64xf32>
    %298 = vector.shape_cast %297 : vector<1x1x64xf32> to vector<64xf32>
    %299 = vector.shape_cast %298 : vector<64xf32> to vector<1x64xf32>
    %300 = vector.broadcast %299 : vector<1x64xf32> to vector<16x64xf32>
    %301 = arith.mulf %296, %300 : vector<16x64xf32>
    %302 = arith.addf %294, %301 : vector<16x64xf32>
    %c24_i32_58 = arith.constant 24 : i32
    %303 = tpu.dynamic_rotate %295 by %c24_i32_58 dim 1 : vector<16x64xf32>, i32 -> vector<16x64xf32>
    %304 = vector.extract_strided_slice %192 {offsets = [2, 1, 0], sizes = [1, 1, 64], strides = [1, 1, 1]} : vector<7x7x64xf32> to vector<1x1x64xf32>
    %305 = vector.shape_cast %304 : vector<1x1x64xf32> to vector<64xf32>
    %306 = vector.shape_cast %305 : vector<64xf32> to vector<1x64xf32>
    %307 = vector.broadcast %306 : vector<1x64xf32> to vector<16x64xf32>
    %308 = arith.mulf %303, %307 : vector<16x64xf32>
    %309 = arith.addf %302, %308 : vector<16x64xf32>
    %c12_i32_59 = arith.constant 12 : i32
    %310 = tpu.dynamic_rotate %295 by %c12_i32_59 dim 1 : vector<16x64xf32>, i32 -> vector<16x64xf32>
    %311 = vector.extract_strided_slice %192 {offsets = [2, 2, 0], sizes = [1, 1, 64], strides = [1, 1, 1]} : vector<7x7x64xf32> to vector<1x1x64xf32>
    %312 = vector.shape_cast %311 : vector<1x1x64xf32> to vector<64xf32>
    %313 = vector.shape_cast %312 : vector<64xf32> to vector<1x64xf32>
    %314 = vector.broadcast %313 : vector<1x64xf32> to vector<16x64xf32>
    %315 = arith.mulf %310, %314 : vector<16x64xf32>
    %316 = arith.addf %309, %315 : vector<16x64xf32>
    %317 = vector.extract_strided_slice %192 {offsets = [2, 3, 0], sizes = [1, 1, 64], strides = [1, 1, 1]} : vector<7x7x64xf32> to vector<1x1x64xf32>
    %318 = vector.shape_cast %317 : vector<1x1x64xf32> to vector<64xf32>
    %319 = vector.shape_cast %318 : vector<64xf32> to vector<1x64xf32>
    %320 = vector.broadcast %319 : vector<1x64xf32> to vector<16x64xf32>
    %321 = arith.mulf %295, %320 : vector<16x64xf32>
    %322 = arith.addf %316, %321 : vector<16x64xf32>
    %c52_i32_60 = arith.constant 52 : i32
    %323 = tpu.dynamic_rotate %295 by %c52_i32_60 dim 1 : vector<16x64xf32>, i32 -> vector<16x64xf32>
    %324 = vector.extract_strided_slice %192 {offsets = [2, 4, 0], sizes = [1, 1, 64], strides = [1, 1, 1]} : vector<7x7x64xf32> to vector<1x1x64xf32>
    %325 = vector.shape_cast %324 : vector<1x1x64xf32> to vector<64xf32>
    %326 = vector.shape_cast %325 : vector<64xf32> to vector<1x64xf32>
    %327 = vector.broadcast %326 : vector<1x64xf32> to vector<16x64xf32>
    %328 = arith.mulf %323, %327 : vector<16x64xf32>
    %329 = arith.addf %322, %328 : vector<16x64xf32>
    %c40_i32_61 = arith.constant 40 : i32
    %330 = tpu.dynamic_rotate %295 by %c40_i32_61 dim 1 : vector<16x64xf32>, i32 -> vector<16x64xf32>
    %331 = vector.extract_strided_slice %192 {offsets = [2, 5, 0], sizes = [1, 1, 64], strides = [1, 1, 1]} : vector<7x7x64xf32> to vector<1x1x64xf32>
    %332 = vector.shape_cast %331 : vector<1x1x64xf32> to vector<64xf32>
    %333 = vector.shape_cast %332 : vector<64xf32> to vector<1x64xf32>
    %334 = vector.broadcast %333 : vector<1x64xf32> to vector<16x64xf32>
    %335 = arith.mulf %330, %334 : vector<16x64xf32>
    %336 = arith.addf %329, %335 : vector<16x64xf32>
    %c28_i32_62 = arith.constant 28 : i32
    %337 = tpu.dynamic_rotate %295 by %c28_i32_62 dim 1 : vector<16x64xf32>, i32 -> vector<16x64xf32>
    %338 = vector.extract_strided_slice %192 {offsets = [2, 6, 0], sizes = [1, 1, 64], strides = [1, 1, 1]} : vector<7x7x64xf32> to vector<1x1x64xf32>
    %339 = vector.shape_cast %338 : vector<1x1x64xf32> to vector<64xf32>
    %340 = vector.shape_cast %339 : vector<64xf32> to vector<1x64xf32>
    %341 = vector.broadcast %340 : vector<1x64xf32> to vector<16x64xf32>
    %342 = arith.mulf %337, %341 : vector<16x64xf32>
    %343 = arith.addf %336, %342 : vector<16x64xf32>
    %c9_63 = arith.constant 9 : index
    %c0_64 = arith.constant 0 : index
    %344 = vector.load %arg10[%c9_63, %c0_64] : memref<34x64xf32, #tpu.memory_space<vmem>>, vector<16x64xf32>
    %c36_i32_65 = arith.constant 36 : i32
    %345 = tpu.dynamic_rotate %344 by %c36_i32_65 dim 1 : vector<16x64xf32>, i32 -> vector<16x64xf32>
    %346 = vector.extract_strided_slice %192 {offsets = [3, 0, 0], sizes = [1, 1, 64], strides = [1, 1, 1]} : vector<7x7x64xf32> to vector<1x1x64xf32>
    %347 = vector.shape_cast %346 : vector<1x1x64xf32> to vector<64xf32>
    %348 = vector.shape_cast %347 : vector<64xf32> to vector<1x64xf32>
    %349 = vector.broadcast %348 : vector<1x64xf32> to vector<16x64xf32>
    %350 = arith.mulf %345, %349 : vector<16x64xf32>
    %351 = arith.addf %343, %350 : vector<16x64xf32>
    %c24_i32_66 = arith.constant 24 : i32
    %352 = tpu.dynamic_rotate %344 by %c24_i32_66 dim 1 : vector<16x64xf32>, i32 -> vector<16x64xf32>
    %353 = vector.extract_strided_slice %192 {offsets = [3, 1, 0], sizes = [1, 1, 64], strides = [1, 1, 1]} : vector<7x7x64xf32> to vector<1x1x64xf32>
    %354 = vector.shape_cast %353 : vector<1x1x64xf32> to vector<64xf32>
    %355 = vector.shape_cast %354 : vector<64xf32> to vector<1x64xf32>
    %356 = vector.broadcast %355 : vector<1x64xf32> to vector<16x64xf32>
    %357 = arith.mulf %352, %356 : vector<16x64xf32>
    %358 = arith.addf %351, %357 : vector<16x64xf32>
    %c12_i32_67 = arith.constant 12 : i32
    %359 = tpu.dynamic_rotate %344 by %c12_i32_67 dim 1 : vector<16x64xf32>, i32 -> vector<16x64xf32>
    %360 = vector.extract_strided_slice %192 {offsets = [3, 2, 0], sizes = [1, 1, 64], strides = [1, 1, 1]} : vector<7x7x64xf32> to vector<1x1x64xf32>
    %361 = vector.shape_cast %360 : vector<1x1x64xf32> to vector<64xf32>
    %362 = vector.shape_cast %361 : vector<64xf32> to vector<1x64xf32>
    %363 = vector.broadcast %362 : vector<1x64xf32> to vector<16x64xf32>
    %364 = arith.mulf %359, %363 : vector<16x64xf32>
    %365 = arith.addf %358, %364 : vector<16x64xf32>
    %366 = vector.extract_strided_slice %192 {offsets = [3, 3, 0], sizes = [1, 1, 64], strides = [1, 1, 1]} : vector<7x7x64xf32> to vector<1x1x64xf32>
    %367 = vector.shape_cast %366 : vector<1x1x64xf32> to vector<64xf32>
    %368 = vector.shape_cast %367 : vector<64xf32> to vector<1x64xf32>
    %369 = vector.broadcast %368 : vector<1x64xf32> to vector<16x64xf32>
    %370 = arith.mulf %344, %369 : vector<16x64xf32>
    %371 = arith.addf %365, %370 : vector<16x64xf32>
    %c52_i32_68 = arith.constant 52 : i32
    %372 = tpu.dynamic_rotate %344 by %c52_i32_68 dim 1 : vector<16x64xf32>, i32 -> vector<16x64xf32>
    %373 = vector.extract_strided_slice %192 {offsets = [3, 4, 0], sizes = [1, 1, 64], strides = [1, 1, 1]} : vector<7x7x64xf32> to vector<1x1x64xf32>
    %374 = vector.shape_cast %373 : vector<1x1x64xf32> to vector<64xf32>
    %375 = vector.shape_cast %374 : vector<64xf32> to vector<1x64xf32>
    %376 = vector.broadcast %375 : vector<1x64xf32> to vector<16x64xf32>
    %377 = arith.mulf %372, %376 : vector<16x64xf32>
    %378 = arith.addf %371, %377 : vector<16x64xf32>
    %c40_i32_69 = arith.constant 40 : i32
    %379 = tpu.dynamic_rotate %344 by %c40_i32_69 dim 1 : vector<16x64xf32>, i32 -> vector<16x64xf32>
    %380 = vector.extract_strided_slice %192 {offsets = [3, 5, 0], sizes = [1, 1, 64], strides = [1, 1, 1]} : vector<7x7x64xf32> to vector<1x1x64xf32>
    %381 = vector.shape_cast %380 : vector<1x1x64xf32> to vector<64xf32>
    %382 = vector.shape_cast %381 : vector<64xf32> to vector<1x64xf32>
    %383 = vector.broadcast %382 : vector<1x64xf32> to vector<16x64xf32>
    %384 = arith.mulf %379, %383 : vector<16x64xf32>
    %385 = arith.addf %378, %384 : vector<16x64xf32>
    %c28_i32_70 = arith.constant 28 : i32
    %386 = tpu.dynamic_rotate %344 by %c28_i32_70 dim 1 : vector<16x64xf32>, i32 -> vector<16x64xf32>
    %387 = vector.extract_strided_slice %192 {offsets = [3, 6, 0], sizes = [1, 1, 64], strides = [1, 1, 1]} : vector<7x7x64xf32> to vector<1x1x64xf32>
    %388 = vector.shape_cast %387 : vector<1x1x64xf32> to vector<64xf32>
    %389 = vector.shape_cast %388 : vector<64xf32> to vector<1x64xf32>
    %390 = vector.broadcast %389 : vector<1x64xf32> to vector<16x64xf32>
    %391 = arith.mulf %386, %390 : vector<16x64xf32>
    %392 = arith.addf %385, %391 : vector<16x64xf32>
    %c12 = arith.constant 12 : index
    %c0_71 = arith.constant 0 : index
    %393 = vector.load %arg10[%c12, %c0_71] : memref<34x64xf32, #tpu.memory_space<vmem>>, vector<16x64xf32>
    %c36_i32_72 = arith.constant 36 : i32
    %394 = tpu.dynamic_rotate %393 by %c36_i32_72 dim 1 : vector<16x64xf32>, i32 -> vector<16x64xf32>
    %395 = vector.extract_strided_slice %192 {offsets = [4, 0, 0], sizes = [1, 1, 64], strides = [1, 1, 1]} : vector<7x7x64xf32> to vector<1x1x64xf32>
    %396 = vector.shape_cast %395 : vector<1x1x64xf32> to vector<64xf32>
    %397 = vector.shape_cast %396 : vector<64xf32> to vector<1x64xf32>
    %398 = vector.broadcast %397 : vector<1x64xf32> to vector<16x64xf32>
    %399 = arith.mulf %394, %398 : vector<16x64xf32>
    %400 = arith.addf %392, %399 : vector<16x64xf32>
    %c24_i32_73 = arith.constant 24 : i32
    %401 = tpu.dynamic_rotate %393 by %c24_i32_73 dim 1 : vector<16x64xf32>, i32 -> vector<16x64xf32>
    %402 = vector.extract_strided_slice %192 {offsets = [4, 1, 0], sizes = [1, 1, 64], strides = [1, 1, 1]} : vector<7x7x64xf32> to vector<1x1x64xf32>
    %403 = vector.shape_cast %402 : vector<1x1x64xf32> to vector<64xf32>
    %404 = vector.shape_cast %403 : vector<64xf32> to vector<1x64xf32>
    %405 = vector.broadcast %404 : vector<1x64xf32> to vector<16x64xf32>
    %406 = arith.mulf %401, %405 : vector<16x64xf32>
    %407 = arith.addf %400, %406 : vector<16x64xf32>
    %c12_i32_74 = arith.constant 12 : i32
    %408 = tpu.dynamic_rotate %393 by %c12_i32_74 dim 1 : vector<16x64xf32>, i32 -> vector<16x64xf32>
    %409 = vector.extract_strided_slice %192 {offsets = [4, 2, 0], sizes = [1, 1, 64], strides = [1, 1, 1]} : vector<7x7x64xf32> to vector<1x1x64xf32>
    %410 = vector.shape_cast %409 : vector<1x1x64xf32> to vector<64xf32>
    %411 = vector.shape_cast %410 : vector<64xf32> to vector<1x64xf32>
    %412 = vector.broadcast %411 : vector<1x64xf32> to vector<16x64xf32>
    %413 = arith.mulf %408, %412 : vector<16x64xf32>
    %414 = arith.addf %407, %413 : vector<16x64xf32>
    %415 = vector.extract_strided_slice %192 {offsets = [4, 3, 0], sizes = [1, 1, 64], strides = [1, 1, 1]} : vector<7x7x64xf32> to vector<1x1x64xf32>
    %416 = vector.shape_cast %415 : vector<1x1x64xf32> to vector<64xf32>
    %417 = vector.shape_cast %416 : vector<64xf32> to vector<1x64xf32>
    %418 = vector.broadcast %417 : vector<1x64xf32> to vector<16x64xf32>
    %419 = arith.mulf %393, %418 : vector<16x64xf32>
    %420 = arith.addf %414, %419 : vector<16x64xf32>
    %c52_i32_75 = arith.constant 52 : i32
    %421 = tpu.dynamic_rotate %393 by %c52_i32_75 dim 1 : vector<16x64xf32>, i32 -> vector<16x64xf32>
    %422 = vector.extract_strided_slice %192 {offsets = [4, 4, 0], sizes = [1, 1, 64], strides = [1, 1, 1]} : vector<7x7x64xf32> to vector<1x1x64xf32>
    %423 = vector.shape_cast %422 : vector<1x1x64xf32> to vector<64xf32>
    %424 = vector.shape_cast %423 : vector<64xf32> to vector<1x64xf32>
    %425 = vector.broadcast %424 : vector<1x64xf32> to vector<16x64xf32>
    %426 = arith.mulf %421, %425 : vector<16x64xf32>
    %427 = arith.addf %420, %426 : vector<16x64xf32>
    %c40_i32_76 = arith.constant 40 : i32
    %428 = tpu.dynamic_rotate %393 by %c40_i32_76 dim 1 : vector<16x64xf32>, i32 -> vector<16x64xf32>
    %429 = vector.extract_strided_slice %192 {offsets = [4, 5, 0], sizes = [1, 1, 64], strides = [1, 1, 1]} : vector<7x7x64xf32> to vector<1x1x64xf32>
    %430 = vector.shape_cast %429 : vector<1x1x64xf32> to vector<64xf32>
    %431 = vector.shape_cast %430 : vector<64xf32> to vector<1x64xf32>
    %432 = vector.broadcast %431 : vector<1x64xf32> to vector<16x64xf32>
    %433 = arith.mulf %428, %432 : vector<16x64xf32>
    %434 = arith.addf %427, %433 : vector<16x64xf32>
    %c28_i32_77 = arith.constant 28 : i32
    %435 = tpu.dynamic_rotate %393 by %c28_i32_77 dim 1 : vector<16x64xf32>, i32 -> vector<16x64xf32>
    %436 = vector.extract_strided_slice %192 {offsets = [4, 6, 0], sizes = [1, 1, 64], strides = [1, 1, 1]} : vector<7x7x64xf32> to vector<1x1x64xf32>
    %437 = vector.shape_cast %436 : vector<1x1x64xf32> to vector<64xf32>
    %438 = vector.shape_cast %437 : vector<64xf32> to vector<1x64xf32>
    %439 = vector.broadcast %438 : vector<1x64xf32> to vector<16x64xf32>
    %440 = arith.mulf %435, %439 : vector<16x64xf32>
    %441 = arith.addf %434, %440 : vector<16x64xf32>
    %c15 = arith.constant 15 : index
    %c0_78 = arith.constant 0 : index
    %442 = vector.load %arg10[%c15, %c0_78] : memref<34x64xf32, #tpu.memory_space<vmem>>, vector<16x64xf32>
    %c36_i32_79 = arith.constant 36 : i32
    %443 = tpu.dynamic_rotate %442 by %c36_i32_79 dim 1 : vector<16x64xf32>, i32 -> vector<16x64xf32>
    %444 = vector.extract_strided_slice %192 {offsets = [5, 0, 0], sizes = [1, 1, 64], strides = [1, 1, 1]} : vector<7x7x64xf32> to vector<1x1x64xf32>
    %445 = vector.shape_cast %444 : vector<1x1x64xf32> to vector<64xf32>
    %446 = vector.shape_cast %445 : vector<64xf32> to vector<1x64xf32>
    %447 = vector.broadcast %446 : vector<1x64xf32> to vector<16x64xf32>
    %448 = arith.mulf %443, %447 : vector<16x64xf32>
    %449 = arith.addf %441, %448 : vector<16x64xf32>
    %c24_i32_80 = arith.constant 24 : i32
    %450 = tpu.dynamic_rotate %442 by %c24_i32_80 dim 1 : vector<16x64xf32>, i32 -> vector<16x64xf32>
    %451 = vector.extract_strided_slice %192 {offsets = [5, 1, 0], sizes = [1, 1, 64], strides = [1, 1, 1]} : vector<7x7x64xf32> to vector<1x1x64xf32>
    %452 = vector.shape_cast %451 : vector<1x1x64xf32> to vector<64xf32>
    %453 = vector.shape_cast %452 : vector<64xf32> to vector<1x64xf32>
    %454 = vector.broadcast %453 : vector<1x64xf32> to vector<16x64xf32>
    %455 = arith.mulf %450, %454 : vector<16x64xf32>
    %456 = arith.addf %449, %455 : vector<16x64xf32>
    %c12_i32_81 = arith.constant 12 : i32
    %457 = tpu.dynamic_rotate %442 by %c12_i32_81 dim 1 : vector<16x64xf32>, i32 -> vector<16x64xf32>
    %458 = vector.extract_strided_slice %192 {offsets = [5, 2, 0], sizes = [1, 1, 64], strides = [1, 1, 1]} : vector<7x7x64xf32> to vector<1x1x64xf32>
    %459 = vector.shape_cast %458 : vector<1x1x64xf32> to vector<64xf32>
    %460 = vector.shape_cast %459 : vector<64xf32> to vector<1x64xf32>
    %461 = vector.broadcast %460 : vector<1x64xf32> to vector<16x64xf32>
    %462 = arith.mulf %457, %461 : vector<16x64xf32>
    %463 = arith.addf %456, %462 : vector<16x64xf32>
    %464 = vector.extract_strided_slice %192 {offsets = [5, 3, 0], sizes = [1, 1, 64], strides = [1, 1, 1]} : vector<7x7x64xf32> to vector<1x1x64xf32>
    %465 = vector.shape_cast %464 : vector<1x1x64xf32> to vector<64xf32>
    %466 = vector.shape_cast %465 : vector<64xf32> to vector<1x64xf32>
    %467 = vector.broadcast %466 : vector<1x64xf32> to vector<16x64xf32>
    %468 = arith.mulf %442, %467 : vector<16x64xf32>
    %469 = arith.addf %463, %468 : vector<16x64xf32>
    %c52_i32_82 = arith.constant 52 : i32
    %470 = tpu.dynamic_rotate %442 by %c52_i32_82 dim 1 : vector<16x64xf32>, i32 -> vector<16x64xf32>
    %471 = vector.extract_strided_slice %192 {offsets = [5, 4, 0], sizes = [1, 1, 64], strides = [1, 1, 1]} : vector<7x7x64xf32> to vector<1x1x64xf32>
    %472 = vector.shape_cast %471 : vector<1x1x64xf32> to vector<64xf32>
    %473 = vector.shape_cast %472 : vector<64xf32> to vector<1x64xf32>
    %474 = vector.broadcast %473 : vector<1x64xf32> to vector<16x64xf32>
    %475 = arith.mulf %470, %474 : vector<16x64xf32>
    %476 = arith.addf %469, %475 : vector<16x64xf32>
    %c40_i32_83 = arith.constant 40 : i32
    %477 = tpu.dynamic_rotate %442 by %c40_i32_83 dim 1 : vector<16x64xf32>, i32 -> vector<16x64xf32>
    %478 = vector.extract_strided_slice %192 {offsets = [5, 5, 0], sizes = [1, 1, 64], strides = [1, 1, 1]} : vector<7x7x64xf32> to vector<1x1x64xf32>
    %479 = vector.shape_cast %478 : vector<1x1x64xf32> to vector<64xf32>
    %480 = vector.shape_cast %479 : vector<64xf32> to vector<1x64xf32>
    %481 = vector.broadcast %480 : vector<1x64xf32> to vector<16x64xf32>
    %482 = arith.mulf %477, %481 : vector<16x64xf32>
    %483 = arith.addf %476, %482 : vector<16x64xf32>
    %c28_i32_84 = arith.constant 28 : i32
    %484 = tpu.dynamic_rotate %442 by %c28_i32_84 dim 1 : vector<16x64xf32>, i32 -> vector<16x64xf32>
    %485 = vector.extract_strided_slice %192 {offsets = [5, 6, 0], sizes = [1, 1, 64], strides = [1, 1, 1]} : vector<7x7x64xf32> to vector<1x1x64xf32>
    %486 = vector.shape_cast %485 : vector<1x1x64xf32> to vector<64xf32>
    %487 = vector.shape_cast %486 : vector<64xf32> to vector<1x64xf32>
    %488 = vector.broadcast %487 : vector<1x64xf32> to vector<16x64xf32>
    %489 = arith.mulf %484, %488 : vector<16x64xf32>
    %490 = arith.addf %483, %489 : vector<16x64xf32>
    %c18_85 = arith.constant 18 : index
    %c0_86 = arith.constant 0 : index
    %491 = vector.load %arg10[%c18_85, %c0_86] : memref<34x64xf32, #tpu.memory_space<vmem>>, vector<16x64xf32>
    %c36_i32_87 = arith.constant 36 : i32
    %492 = tpu.dynamic_rotate %491 by %c36_i32_87 dim 1 : vector<16x64xf32>, i32 -> vector<16x64xf32>
    %493 = vector.extract_strided_slice %192 {offsets = [6, 0, 0], sizes = [1, 1, 64], strides = [1, 1, 1]} : vector<7x7x64xf32> to vector<1x1x64xf32>
    %494 = vector.shape_cast %493 : vector<1x1x64xf32> to vector<64xf32>
    %495 = vector.shape_cast %494 : vector<64xf32> to vector<1x64xf32>
    %496 = vector.broadcast %495 : vector<1x64xf32> to vector<16x64xf32>
    %497 = arith.mulf %492, %496 : vector<16x64xf32>
    %498 = arith.addf %490, %497 : vector<16x64xf32>
    %c24_i32_88 = arith.constant 24 : i32
    %499 = tpu.dynamic_rotate %491 by %c24_i32_88 dim 1 : vector<16x64xf32>, i32 -> vector<16x64xf32>
    %500 = vector.extract_strided_slice %192 {offsets = [6, 1, 0], sizes = [1, 1, 64], strides = [1, 1, 1]} : vector<7x7x64xf32> to vector<1x1x64xf32>
    %501 = vector.shape_cast %500 : vector<1x1x64xf32> to vector<64xf32>
    %502 = vector.shape_cast %501 : vector<64xf32> to vector<1x64xf32>
    %503 = vector.broadcast %502 : vector<1x64xf32> to vector<16x64xf32>
    %504 = arith.mulf %499, %503 : vector<16x64xf32>
    %505 = arith.addf %498, %504 : vector<16x64xf32>
    %c12_i32_89 = arith.constant 12 : i32
    %506 = tpu.dynamic_rotate %491 by %c12_i32_89 dim 1 : vector<16x64xf32>, i32 -> vector<16x64xf32>
    %507 = vector.extract_strided_slice %192 {offsets = [6, 2, 0], sizes = [1, 1, 64], strides = [1, 1, 1]} : vector<7x7x64xf32> to vector<1x1x64xf32>
    %508 = vector.shape_cast %507 : vector<1x1x64xf32> to vector<64xf32>
    %509 = vector.shape_cast %508 : vector<64xf32> to vector<1x64xf32>
    %510 = vector.broadcast %509 : vector<1x64xf32> to vector<16x64xf32>
    %511 = arith.mulf %506, %510 : vector<16x64xf32>
    %512 = arith.addf %505, %511 : vector<16x64xf32>
    %513 = vector.extract_strided_slice %192 {offsets = [6, 3, 0], sizes = [1, 1, 64], strides = [1, 1, 1]} : vector<7x7x64xf32> to vector<1x1x64xf32>
    %514 = vector.shape_cast %513 : vector<1x1x64xf32> to vector<64xf32>
    %515 = vector.shape_cast %514 : vector<64xf32> to vector<1x64xf32>
    %516 = vector.broadcast %515 : vector<1x64xf32> to vector<16x64xf32>
    %517 = arith.mulf %491, %516 : vector<16x64xf32>
    %518 = arith.addf %512, %517 : vector<16x64xf32>
    %c52_i32_90 = arith.constant 52 : i32
    %519 = tpu.dynamic_rotate %491 by %c52_i32_90 dim 1 : vector<16x64xf32>, i32 -> vector<16x64xf32>
    %520 = vector.extract_strided_slice %192 {offsets = [6, 4, 0], sizes = [1, 1, 64], strides = [1, 1, 1]} : vector<7x7x64xf32> to vector<1x1x64xf32>
    %521 = vector.shape_cast %520 : vector<1x1x64xf32> to vector<64xf32>
    %522 = vector.shape_cast %521 : vector<64xf32> to vector<1x64xf32>
    %523 = vector.broadcast %522 : vector<1x64xf32> to vector<16x64xf32>
    %524 = arith.mulf %519, %523 : vector<16x64xf32>
    %525 = arith.addf %518, %524 : vector<16x64xf32>
    %c40_i32_91 = arith.constant 40 : i32
    %526 = tpu.dynamic_rotate %491 by %c40_i32_91 dim 1 : vector<16x64xf32>, i32 -> vector<16x64xf32>
    %527 = vector.extract_strided_slice %192 {offsets = [6, 5, 0], sizes = [1, 1, 64], strides = [1, 1, 1]} : vector<7x7x64xf32> to vector<1x1x64xf32>
    %528 = vector.shape_cast %527 : vector<1x1x64xf32> to vector<64xf32>
    %529 = vector.shape_cast %528 : vector<64xf32> to vector<1x64xf32>
    %530 = vector.broadcast %529 : vector<1x64xf32> to vector<16x64xf32>
    %531 = arith.mulf %526, %530 : vector<16x64xf32>
    %532 = arith.addf %525, %531 : vector<16x64xf32>
    %c28_i32_92 = arith.constant 28 : i32
    %533 = tpu.dynamic_rotate %491 by %c28_i32_92 dim 1 : vector<16x64xf32>, i32 -> vector<16x64xf32>
    %534 = vector.extract_strided_slice %192 {offsets = [6, 6, 0], sizes = [1, 1, 64], strides = [1, 1, 1]} : vector<7x7x64xf32> to vector<1x1x64xf32>
    %535 = vector.shape_cast %534 : vector<1x1x64xf32> to vector<64xf32>
    %536 = vector.shape_cast %535 : vector<64xf32> to vector<1x64xf32>
    %537 = vector.broadcast %536 : vector<1x64xf32> to vector<16x64xf32>
    %538 = arith.mulf %533, %537 : vector<16x64xf32>
    %539 = arith.addf %532, %538 : vector<16x64xf32>
    %c0_93 = arith.constant 0 : index
    %c0_94 = arith.constant 0 : index
    %540 = vector.load %arg6[%c0_93, %c0_94] : memref<7x64xf32, #tpu.memory_space<vmem>>, vector<7x64xf32>
    %c0_95 = arith.constant 0 : index
    %c0_96 = arith.constant 0 : index
    %541 = vector.load %arg7[%c0_95, %c0_96] : memref<1x64xf32, #tpu.memory_space<vmem>>, vector<1x64xf32>
    %542 = vector.shape_cast %541 : vector<1x64xf32> to vector<64xf32>
    %543 = vector.shape_cast %542 : vector<64xf32> to vector<1x64xf32>
    %544 = vector.broadcast %543 : vector<1x64xf32> to vector<16x64xf32>
    %c3_i32 = arith.constant 3 : i32
    %545 = tpu.dynamic_rotate %539 by %c3_i32 dim 1 : vector<16x64xf32>, i32 -> vector<16x64xf32>
    %546 = vector.extract_strided_slice %540 {offsets = [0, 0], sizes = [1, 64], strides = [1, 1]} : vector<7x64xf32> to vector<1x64xf32>
    %547 = vector.shape_cast %546 : vector<1x64xf32> to vector<64xf32>
    %548 = vector.shape_cast %547 : vector<64xf32> to vector<1x64xf32>
    %549 = vector.broadcast %548 : vector<1x64xf32> to vector<16x64xf32>
    %550 = arith.mulf %545, %549 : vector<16x64xf32>
    %551 = arith.addf %544, %550 : vector<16x64xf32>
    %c2_i32 = arith.constant 2 : i32
    %552 = tpu.dynamic_rotate %539 by %c2_i32 dim 1 : vector<16x64xf32>, i32 -> vector<16x64xf32>
    %553 = vector.extract_strided_slice %540 {offsets = [1, 0], sizes = [1, 64], strides = [1, 1]} : vector<7x64xf32> to vector<1x64xf32>
    %554 = vector.shape_cast %553 : vector<1x64xf32> to vector<64xf32>
    %555 = vector.shape_cast %554 : vector<64xf32> to vector<1x64xf32>
    %556 = vector.broadcast %555 : vector<1x64xf32> to vector<16x64xf32>
    %557 = arith.mulf %552, %556 : vector<16x64xf32>
    %558 = arith.addf %551, %557 : vector<16x64xf32>
    %c1_i32 = arith.constant 1 : i32
    %559 = tpu.dynamic_rotate %539 by %c1_i32 dim 1 : vector<16x64xf32>, i32 -> vector<16x64xf32>
    %560 = vector.extract_strided_slice %540 {offsets = [2, 0], sizes = [1, 64], strides = [1, 1]} : vector<7x64xf32> to vector<1x64xf32>
    %561 = vector.shape_cast %560 : vector<1x64xf32> to vector<64xf32>
    %562 = vector.shape_cast %561 : vector<64xf32> to vector<1x64xf32>
    %563 = vector.broadcast %562 : vector<1x64xf32> to vector<16x64xf32>
    %564 = arith.mulf %559, %563 : vector<16x64xf32>
    %565 = arith.addf %558, %564 : vector<16x64xf32>
    %566 = vector.extract_strided_slice %540 {offsets = [3, 0], sizes = [1, 64], strides = [1, 1]} : vector<7x64xf32> to vector<1x64xf32>
    %567 = vector.shape_cast %566 : vector<1x64xf32> to vector<64xf32>
    %568 = vector.shape_cast %567 : vector<64xf32> to vector<1x64xf32>
    %569 = vector.broadcast %568 : vector<1x64xf32> to vector<16x64xf32>
    %570 = arith.mulf %539, %569 : vector<16x64xf32>
    %571 = arith.addf %565, %570 : vector<16x64xf32>
    %c63_i32 = arith.constant 63 : i32
    %572 = tpu.dynamic_rotate %539 by %c63_i32 dim 1 : vector<16x64xf32>, i32 -> vector<16x64xf32>
    %573 = vector.extract_strided_slice %540 {offsets = [4, 0], sizes = [1, 64], strides = [1, 1]} : vector<7x64xf32> to vector<1x64xf32>
    %574 = vector.shape_cast %573 : vector<1x64xf32> to vector<64xf32>
    %575 = vector.shape_cast %574 : vector<64xf32> to vector<1x64xf32>
    %576 = vector.broadcast %575 : vector<1x64xf32> to vector<16x64xf32>
    %577 = arith.mulf %572, %576 : vector<16x64xf32>
    %578 = arith.addf %571, %577 : vector<16x64xf32>
    %c62_i32 = arith.constant 62 : i32
    %579 = tpu.dynamic_rotate %539 by %c62_i32 dim 1 : vector<16x64xf32>, i32 -> vector<16x64xf32>
    %580 = vector.extract_strided_slice %540 {offsets = [5, 0], sizes = [1, 64], strides = [1, 1]} : vector<7x64xf32> to vector<1x64xf32>
    %581 = vector.shape_cast %580 : vector<1x64xf32> to vector<64xf32>
    %582 = vector.shape_cast %581 : vector<64xf32> to vector<1x64xf32>
    %583 = vector.broadcast %582 : vector<1x64xf32> to vector<16x64xf32>
    %584 = arith.mulf %579, %583 : vector<16x64xf32>
    %585 = arith.addf %578, %584 : vector<16x64xf32>
    %c61_i32 = arith.constant 61 : i32
    %586 = tpu.dynamic_rotate %539 by %c61_i32 dim 1 : vector<16x64xf32>, i32 -> vector<16x64xf32>
    %587 = vector.extract_strided_slice %540 {offsets = [6, 0], sizes = [1, 64], strides = [1, 1]} : vector<7x64xf32> to vector<1x64xf32>
    %588 = vector.shape_cast %587 : vector<1x64xf32> to vector<64xf32>
    %589 = vector.shape_cast %588 : vector<64xf32> to vector<1x64xf32>
    %590 = vector.broadcast %589 : vector<1x64xf32> to vector<16x64xf32>
    %591 = arith.mulf %586, %590 : vector<16x64xf32>
    %592 = arith.addf %585, %591 : vector<16x64xf32>
    %c0_97 = arith.constant 0 : index
    %c0_98 = arith.constant 0 : index
    %c0_99 = arith.constant 0 : index
    %593 = vector.load %arg1[%c0_97, %c0_98, %c0_99] : memref<1x16x64xf32, #tpu.memory_space<vmem>>, vector<1x16x64xf32>
    %594 = vector.shape_cast %593 : vector<1x16x64xf32> to vector<16x64xf32>
    %595 = arith.mulf %594, %592 : vector<16x64xf32>
    %c0_100 = arith.constant 0 : index
    %c0_101 = arith.constant 0 : index
    %c0_102 = arith.constant 0 : index
    %596 = vector.load %arg8[%c0_100, %c0_101, %c0_102] : memref<1x16x64xf32, #tpu.memory_space<vmem>>, vector<1x16x64xf32>
    %597 = vector.shape_cast %596 : vector<1x16x64xf32> to vector<16x64xf32>
    %598 = vector.shape_cast %595 : vector<16x64xf32> to vector<1x16x64xf32>
    tpu.vector_store %arg8[%c0_100, %c0_101, %c0_102], %598 {strides = array<i32>} : memref<1x16x64xf32, #tpu.memory_space<vmem>>, vector<1x16x64xf32>,
    return
  }
  func.func @transform_0(%arg0: i32) -> (i32, i32, i32) {
    %c0_i32 = arith.constant 0 : i32
    %c0_i32_0 = arith.constant 0 : i32
    %c0_i32_1 = arith.constant 0 : i32
    return %arg0, %c0_i32, %c0_i32_0 : i32, i32, i32
  }
  func.func @transform_1(%arg0: i32) -> (i32, i32, i32) {
    %c0_i32 = arith.constant 0 : i32
    %c0_i32_0 = arith.constant 0 : i32
    %c0_i32_1 = arith.constant 0 : i32
    %c0_i32_2 = arith.constant 0 : i32
    return %c0_i32, %c0_i32_0, %c0_i32_1 : i32, i32, i32
  }
  func.func @transform_2(%arg0: i32) -> (i32, i32) {
    %c0_i32 = arith.constant 0 : i32
    %c0_i32_0 = arith.constant 0 : i32
    %c0_i32_1 = arith.constant 0 : i32
    return %c0_i32, %c0_i32_0 : i32, i32
  }
  func.func @transform_3(%arg0: i32) -> (i32, i32, i32) {
    %c0_i32 = arith.constant 0 : i32
    %c0_i32_0 = arith.constant 0 : i32
    %c0_i32_1 = arith.constant 0 : i32
    %c0_i32_2 = arith.constant 0 : i32
    return %c0_i32, %c0_i32_0, %c0_i32_1 : i32, i32, i32
  }
  func.func @transform_4(%arg0: i32) -> (i32, i32) {
    %c0_i32 = arith.constant 0 : i32
    %c0_i32_0 = arith.constant 0 : i32
    %c0_i32_1 = arith.constant 0 : i32
    return %c0_i32, %c0_i32_0 : i32, i32
  }
  func.func @transform_5(%arg0: i32) -> (i32, i32) {
    %c0_i32 = arith.constant 0 : i32
    %c0_i32_0 = arith.constant 0 : i32
    %c0_i32_1 = arith.constant 0 : i32
    return %c0_i32, %c0_i32_0 : i32, i32
  }
  func.func @transform_6(%arg0: i32) -> (i32, i32) {
    %c0_i32 = arith.constant 0 : i32
    %c0_i32_0 = arith.constant 0 : i32
    %c0_i32_1 = arith.constant 0 : i32
    return %c0_i32, %c0_i32_0 : i32, i32
  }
  func.func @transform_7(%arg0: i32) -> (i32, i32, i32) {
    %c0_i32 = arith.constant 0 : i32
    %c0_i32_0 = arith.constant 0 : i32
    %c0_i32_1 = arith.constant 0 : i32
    return %arg0, %c0_i32, %c0_i32_0 : i32, i32, i32
  }
}

</mosaic_0001>

<llo_original>
// kernel: tpu_custom_call.1
$region0: #{tpu_custom_call.1}
  #allocation0 [shape = 'u32[]', space=smem, size = 0x4, offset = 0x4, fixed_abs, tag = 'smem constant byte address 0x4 - core index']
  #allocation1 [shape = 'u32[144,128]{1,0:T(1,128)}', space=vmem, size = 0x12000, scoped, tag = 'internal scratch']
  #allocation2 [shape = 'f32[20,64]{1,0:T(8,128)}', space=vmem, size = 0x3000, scoped, tag = 'scratch operand']
  #allocation3 [shape = 'f32[34,64]{1,0:T(8,128)}', space=vmem, size = 0x5000, scoped, tag = 'scratch operand']
  %s0 = inlined_call_operand.hbm [shape: f32[2,16,64], index: 0, kind: input, shape index: {}]
  %s1 = inlined_call_operand.hbm [shape: f32[5,5,64], index: 1, kind: input, shape index: {}]
  %s2 = inlined_call_operand.vmem [shape: f32[1,64], index: 2, kind: input, shape index: {}]
  %s3 = inlined_call_operand.hbm [shape: f32[7,7,64], index: 3, kind: input, shape index: {}]
  %s4 = inlined_call_operand.hbm [shape: f32[1,64], index: 4, kind: input, shape index: {}]
  %s5 = inlined_call_operand.vmem [shape: f32[7,64], index: 5, kind: input, shape index: {}]
  %s6 = inlined_call_operand.vmem [shape: f32[1,64], index: 6, kind: input, shape index: {}]
  %s7 = inlined_call_operand.hbm [shape: f32[2,16,64], index: 7, kind: output, shape index: {}]
  %s8 = sld [smem:[#allocation0]]
  $region77: #{tpu_custom_call.1} parent=0
    _
  %s10 = ssub.s32 1, %s8
  %s11 = scalar_select 0, %s10, %s8
  $region1: #{tpu_custom_call.1} parent=0
    #allocation4 [shape = 'u8[16384]{0}', space=vmem, size = 0x4000, scoped, tag = 'input window, operand 0']
    #allocation5 [shape = 's32[2]{0}', space=sflag, size = 0x8, scoped, tag = 'scoped memory for tpu_custom_call.1']
    #allocation6 [shape = 's32[2]{0}', space=sflag, size = 0x8, scoped, tag = 'scoped memory for tpu_custom_call.1']
    #allocation7 [shape = 'u8[20480]{0}', space=vmem, size = 0x5000, scoped, tag = 'input window, operand 1, single buffered']
    #allocation8 [shape = 's32[1]{0}', space=sflag, size = 0x4, scoped, tag = 'scoped memory for tpu_custom_call.1']
    #allocation9 [shape = 'u8[28672]{0}', space=vmem, size = 0x7000, scoped, tag = 'input window, operand 3, single buffered']
    #allocation10 [shape = 'u8[512]{0}', space=vmem, size = 0x400, scoped, tag = 'input window, operand 4, single buffered']
    #allocation11 [shape = 's32[1]{0}', space=sflag, size = 0x4, scoped, tag = 'scoped memory for tpu_custom_call.1']
    #allocation12 [shape = 'u8[16384]{0}', space=vmem, size = 0x4000, scoped, tag = 'output window, operand 0']
    %12 = vsyncpa [#allocation5], 0
    %s13 = scalar_lea.sflag [#allocation5], 1
    %14 = vsyncpa %s13, 0
    %15 = vsyncpa [#allocation8], 0
    %16 = vsyncpa [#allocation11], 0
    %17 = vsyncpa [#allocation6], 0
    %s18 = scalar_lea.sflag [#allocation6], 1
    %19 = vsyncpa %s18, 0
    loop: start=0, step=1, limit=4
    $region2: #{tpu_custom_call.1} parent=1 // loop_pre_header
      _
    $region3: #{tpu_custom_call.1} parent=1 // loop_header
      %s21 = sphi 0, %s25
      %p22 = scmp.ge.s32.totalorder %s21, 4
      %s31 = sphi 0, %s33
      %s34 = sphi 0, %s31
      %s35 = sphi 0, %s34
      %s51 = sphi 0, %s35
      %s55 = sphi 0, %s55
      %s57 = sphi 0, %s55
      %s58 = sphi 0, %s57
      %s72 = sphi 0, %s58
      %s76 = sphi 0, %s76
      %s78 = sphi 0, %s76
      %s79 = sphi 0, %s78
      %s93 = sphi 0, %s79
      %s97 = sphi 0, %s97
      %s99 = sphi 0, %s97
      %s100 = sphi 0, %s99
      %s114 = sphi 0, %s100
      %s118 = sphi 0, %s118
      %s120 = sphi 0, %s118
      %s121 = sphi 0, %s120
      %s135 = sphi 0, %s121
      %s139 = sphi 0, %s139
      %s141 = sphi 0, %s139
      %s142 = sphi 0, %s141
      %s156 = sphi 0, %s142
      %s160 = sphi 0, %s160
      %s162 = sphi 0, %s160
      %s163 = sphi 0, %s162
      %s177 = sphi 0, %s163
      %s183 = sphi 0, %s185
      %s186 = sphi 0, %s183
      %s187 = sphi 0, %s186
      %s203 = sphi 0, %s187
    $region4: #{tpu_custom_call.1} parent=1 // loop_header_branch
      %24 = sbr.rel (%p22) target = $region8
    $region5: #{tpu_custom_call.1} parent=1 // loop_body
      %s26 = ssub.s32 %s21, 1
      %s27 = ssub.s32 %s21, 2
      %s28 = sadd.s32 %s21, 1
      %s29 = ssub.s32 %s21, %s28
      %p30 = scmp.eq.s32.totalorder %s29, 0
      %s32 = sadd.s32 %s31, 1
      %s33 = scalar_select %p30, %s31, %s32
      %p36 = pneg %p30
      %p37 = scmp.eq.s32.totalorder %s21, 1
      %p38 = por %p36, %p37
      %p39 = scmp.ne.s32.totalorder %s31, %s34
      %p40 = scmp.eq.s32.totalorder %s21, 0
      %p41 = por %p39, %p40
      %p42 = scmp.ne.s32.totalorder %s31, %s34
      %p43 = scmp.eq.s32.totalorder %s26, 1
      %p44 = por %p42, %p43
      %p45 = scmp.ne.s32.totalorder %s34, %s35
      %p46 = scmp.eq.s32.totalorder %s26, 0
      %p47 = por %p45, %p46
      %p48 = scmp.ne.s32.totalorder %s34, %s35
      %p49 = scmp.eq.s32.totalorder %s27, 1
      %p50 = por %p48, %p49
      %p52 = scmp.ne.s32.totalorder %s35, %s51
      %p53 = scmp.eq.s32.totalorder %s27, 0
      %p54 = por %p52, %p53
      %s56 = sadd.s32 %s55, 1
      %p59 = scmp.eq.s32.totalorder %s21, 1
      %p60 = scmp.ne.s32.totalorder %s55, %s57
      %p61 = scmp.eq.s32.totalorder %s21, 0
      %p62 = por %p60, %p61
      %p63 = scmp.ne.s32.totalorder %s55, %s57
      %p64 = scmp.eq.s32.totalorder %s26, 1
      %p65 = por %p63, %p64
      %p66 = scmp.ne.s32.totalorder %s57, %s58
      %p67 = scmp.eq.s32.totalorder %s26, 0
      %p68 = por %p66, %p67
      %p69 = scmp.ne.s32.totalorder %s57, %s58
      %p70 = scmp.eq.s32.totalorder %s27, 1
      %p71 = por %p69, %p70
      %p73 = scmp.ne.s32.totalorder %s58, %s72
      %p74 = scmp.eq.s32.totalorder %s27, 0
      %p75 = por %p73, %p74
      %s77 = sadd.s32 %s76, 1
      %p80 = scmp.eq.s32.totalorder %s21, 1
      %p81 = scmp.ne.s32.totalorder %s76, %s78
      %p82 = scmp.eq.s32.totalorder %s21, 0
      %p83 = por %p81, %p82
      %p84 = scmp.ne.s32.totalorder %s76, %s78
      %p85 = scmp.eq.s32.totalorder %s26, 1
      %p86 = por %p84, %p85
      %p87 = scmp.ne.s32.totalorder %s78, %s79
      %p88 = scmp.eq.s32.totalorder %s26, 0
      %p89 = por %p87, %p88
      %p90 = scmp.ne.s32.totalorder %s78, %s79
      %p91 = scmp.eq.s32.totalorder %s27, 1
      %p92 = por %p90, %p91
      %p94 = scmp.ne.s32.totalorder %s79, %s93
      %p95 = scmp.eq.s32.totalorder %s27, 0
      %p96 = por %p94, %p95
      %s98 = sadd.s32 %s97, 1
      %p101 = scmp.eq.s32.totalorder %s21, 1
      %p102 = scmp.ne.s32.totalorder %s97, %s99
      %p103 = scmp.eq.s32.totalorder %s21, 0
      %p104 = por %p102, %p103
      %p105 = scmp.ne.s32.totalorder %s97, %s99
      %p106 = scmp.eq.s32.totalorder %s26, 1
      %p107 = por %p105, %p106
      %p108 = scmp.ne.s32.totalorder %s99, %s100
      %p109 = scmp.eq.s32.totalorder %s26, 0
      %p110 = por %p108, %p109
      %p111 = scmp.ne.s32.totalorder %s99, %s100
      %p112 = scmp.eq.s32.totalorder %s27, 1
      %p113 = por %p111, %p112
      %p115 = scmp.ne.s32.totalorder %s100, %s114
      %p116 = scmp.eq.s32.totalorder %s27, 0
      %p117 = por %p115, %p116
      %s119 = sadd.s32 %s118, 1
      %p122 = scmp.eq.s32.totalorder %s21, 1
      %p123 = scmp.ne.s32.totalorder %s118, %s120
      %p124 = scmp.eq.s32.totalorder %s21, 0
      %p125 = por %p123, %p124
      %p126 = scmp.ne.s32.totalorder %s118, %s120
      %p127 = scmp.eq.s32.totalorder %s26, 1
      %p128 = por %p126, %p127
      %p129 = scmp.ne.s32.totalorder %s120, %s121
      %p130 = scmp.eq.s32.totalorder %s26, 0
      %p131 = por %p129, %p130
      %p132 = scmp.ne.s32.totalorder %s120, %s121
      %p133 = scmp.eq.s32.totalorder %s27, 1
      %p134 = por %p132, %p133
      %p136 = scmp.ne.s32.totalorder %s121, %s135
      %p137 = scmp.eq.s32.totalorder %s27, 0
      %p138 = por %p136, %p137
      %s140 = sadd.s32 %s139, 1
      %p143 = scmp.eq.s32.totalorder %s21, 1
      %p144 = scmp.ne.s32.totalorder %s139, %s141
      %p145 = scmp.eq.s32.totalorder %s21, 0
      %p146 = por %p144, %p145
      %p147 = scmp.ne.s32.totalorder %s139, %s141
      %p148 = scmp.eq.s32.totalorder %s26, 1
      %p149 = por %p147, %p148
      %p150 = scmp.ne.s32.totalorder %s141, %s142
      %p151 = scmp.eq.s32.totalorder %s26, 0
      %p152 = por %p150, %p151
      %p153 = scmp.ne.s32.totalorder %s141, %s142
      %p154 = scmp.eq.s32.totalorder %s27, 1
      %p155 = por %p153, %p154
      %p157 = scmp.ne.s32.totalorder %s142, %s156
      %p158 = scmp.eq.s32.totalorder %s27, 0
      %p159 = por %p157, %p158
      %s161 = sadd.s32 %s160, 1
      %p164 = scmp.eq.s32.totalorder %s21, 1
      %p165 = scmp.ne.s32.totalorder %s160, %s162
      %p166 = scmp.eq.s32.totalorder %s21, 0
      %p167 = por %p165, %p166
      %p168 = scmp.ne.s32.totalorder %s160, %s162
      %p169 = scmp.eq.s32.totalorder %s26, 1
      %p170 = por %p168, %p169
      %p171 = scmp.ne.s32.totalorder %s162, %s163
      %p172 = scmp.eq.s32.totalorder %s26, 0
      %p173 = por %p171, %p172
      %p174 = scmp.ne.s32.totalorder %s162, %s163
      %p175 = scmp.eq.s32.totalorder %s27, 1
      %p176 = por %p174, %p175
      %p178 = scmp.ne.s32.totalorder %s163, %s177
      %p179 = scmp.eq.s32.totalorder %s27, 0
      %p180 = por %p178, %p179
      %s181 = ssub.s32 %s21, %s28
      %p182 = scmp.eq.s32.totalorder %s181, 0
      %s184 = sadd.s32 %s183, 1
      %s185 = scalar_select %p182, %s183, %s184
      %p188 = pneg %p182
      %p189 = scmp.eq.s32.totalorder %s21, 1
      %p190 = por %p188, %p189
      %p191 = scmp.ne.s32.totalorder %s183, %s186
      %p192 = scmp.eq.s32.totalorder %s21, 0
      %p193 = por %p191, %p192
      %p194 = scmp.ne.s32.totalorder %s183, %s186
      %p195 = scmp.eq.s32.totalorder %s26, 1
      %p196 = por %p194, %p195
      %p197 = scmp.ne.s32.totalorder %s186, %s187
      %p198 = scmp.eq.s32.totalorder %s26, 0
      %p199 = por %p197, %p198
      %p200 = scmp.ne.s32.totalorder %s186, %s187
      %p201 = scmp.eq.s32.totalorder %s27, 1
      %p202 = por %p200, %p201
      %p204 = scmp.ne.s32.totalorder %s187, %s203
      %p205 = scmp.eq.s32.totalorder %s27, 0
      %p206 = por %p204, %p205
      %p207 = scmp.le.s32.totalorder 1, %s21
      %p208 = scmp.lt.s32.totalorder %s21, 3
      %p209 = pnand %p207, %p208
      %p210 = pneg %p209
      // Predicated region
      $region9: #{tpu_custom_call.1} parent=5 // pred_check
        _
      $region10: #{tpu_custom_call.1} parent=5 // pred_check_branch
        %212 = sbr.rel (%p209) target = $region12
      $region11: #{tpu_custom_call.1} parent=5 // pred_region
        %s213 = ssub.s32 %s21, 1
        // Predicated region
        $region13: #{tpu_custom_call.1} parent=11 // pred_check
          %p214 = pneg %p68
        $region14: #{tpu_custom_call.1} parent=11 // pred_check_branch
          %216 = sbr.rel (%p214) target = $region16
        $region15: #{tpu_custom_call.1} parent=11 // pred_region
          %s218 = ssub.s32 640, 640
          %219 = vsyncadd [#allocation8], %s218
          %s220 = sshll.u32 [#allocation7], 4
          %s221 = int_to_ptr.vmem [resolvable:$true] %s220
          %226 = dma.hbm_to_vmem [thread:$0]  %s1, 640, %s221, [#allocation8], 128, 128, 8
        $region16: #{tpu_custom_call.1} parent=11 // pred_fallthru
          _
        // Predicated region
        $region17: #{tpu_custom_call.1} parent=11 // pred_check
          %p227 = pneg %p89
        $region18: #{tpu_custom_call.1} parent=11 // pred_check_branch
          %229 = sbr.rel (%p227) target = $region20
        $region19: #{tpu_custom_call.1} parent=11 // pred_region
          _
        $region20: #{tpu_custom_call.1} parent=11 // pred_fallthru
          _
        // Predicated region
        $region21: #{tpu_custom_call.1} parent=11 // pred_check
          %p230 = pneg %p110
        $region22: #{tpu_custom_call.1} parent=11 // pred_check_branch
          %232 = sbr.rel (%p230) target = $region24
        $region23: #{tpu_custom_call.1} parent=11 // pred_region
          %s234 = ssub.s32 896, 896
          %235 = vsyncadd [#allocation8], %s234
          %s236 = sshll.u32 [#allocation9], 4
          %s237 = int_to_ptr.vmem [resolvable:$true] %s236
          %242 = dma.hbm_to_vmem [thread:$0]  %s3, 896, %s237, [#allocation8], 128, 128, 8
        $region24: #{tpu_custom_call.1} parent=11 // pred_fallthru
          _
        // Predicated region
        $region25: #{tpu_custom_call.1} parent=11 // pred_check
          %p243 = pneg %p131
        $region26: #{tpu_custom_call.1} parent=11 // pred_check_branch
          %245 = sbr.rel (%p243) target = $region28
        $region27: #{tpu_custom_call.1} parent=11 // pred_region
          %s247 = ssub.s32 16, 16
          %248 = vsyncadd [#allocation11], %s247
          %s250 = sshll.u32 [#allocation10], 4
          %s251 = int_to_ptr.vmem [resolvable:$true] %s250
          %253 = dma.hbm_to_vmem [thread:$0]  %s4, 16, %s251, [#allocation11]
        $region28: #{tpu_custom_call.1} parent=11 // pred_fallthru
          _
        // Predicated region
        $region29: #{tpu_custom_call.1} parent=11 // pred_check
          %p254 = pneg %p152
        $region30: #{tpu_custom_call.1} parent=11 // pred_check_branch
          %256 = sbr.rel (%p254) target = $region32
        $region31: #{tpu_custom_call.1} parent=11 // pred_region
          _
        $region32: #{tpu_custom_call.1} parent=11 // pred_fallthru
          _
        // Predicated region
        $region33: #{tpu_custom_call.1} parent=11 // pred_check
          %p257 = pneg %p173
        $region34: #{tpu_custom_call.1} parent=11 // pred_check_branch
          %259 = sbr.rel (%p257) target = $region36
        $region35: #{tpu_custom_call.1} parent=11 // pred_region
          _
        $region36: #{tpu_custom_call.1} parent=11 // pred_fallthru
          _
      $region12: #{tpu_custom_call.1} parent=5 // pred_fallthru
        _
      %p260 = scmp.lt.s32.totalorder %s21, 2
      // Predicated region
      $region37: #{tpu_custom_call.1} parent=5 // pred_check
        %p261 = pneg %p260
      $region38: #{tpu_custom_call.1} parent=5 // pred_check_branch
        %263 = sbr.rel (%p261) target = $region40
      $region39: #{tpu_custom_call.1} parent=5 // pred_region
        // Predicated region
        $region41: #{tpu_custom_call.1} parent=39 // pred_check
          %p264 = pneg %p41
        $region42: #{tpu_custom_call.1} parent=39 // pred_check_branch
          %266 = sbr.rel (%p264) target = $region44
        $region43: #{tpu_custom_call.1} parent=39 // pred_region
          %s267 = sand.u32 %s31, 1
          %s268 = scalar_lea.sflag [#allocation5], %s267
          %s269 = sand.u32 %s31, 1
          %s270 = smul.addr %s269, 16
          %s271 = scalar_lea.vmem [#allocation4], %s270
          %s273 = ssub.s32 256, 256
          %274 = vsyncadd %s268, %s273
          %s275 = smul.addr %s21, 2
          %s276 = smul.addr %s275, 128
          %s277 = scalar_lea.hbm %s0, %s276
          %s278 = sshll.u32 %s271, 4
          %s279 = int_to_ptr.vmem [resolvable:$true] %s278
          %284 = dma.hbm_to_vmem [thread:$0]  %s277, 256, %s279, %s268, 128, 128, 8
        $region44: #{tpu_custom_call.1} parent=39 // pred_fallthru
          _
      $region40: #{tpu_custom_call.1} parent=5 // pred_fallthru
        _
      %p285 = scmp.le.s32.totalorder 1, %s21
      %p286 = scmp.lt.s32.totalorder %s21, 3
      %p287 = pnand %p285, %p286
      %p288 = pneg %p287
      // Predicated region
      $region45: #{tpu_custom_call.1} parent=5 // pred_check
        _
      $region46: #{tpu_custom_call.1} parent=5 // pred_check_branch
        %290 = sbr.rel (%p287) target = $region48
      $region47: #{tpu_custom_call.1} parent=5 // pred_region
        %s291 = ssub.s32 %s21, 1
        %s292 = sand.u32 %s34, 1
        %s293 = scalar_lea.sflag [#allocation5], %s292
        %s294 = sand.u32 %s34, 1
        %s295 = smul.addr %s294, 16
        %s296 = scalar_lea.vmem [#allocation4], %s295
        // Predicated region
        $region49: #{tpu_custom_call.1} parent=47 // pred_check
          %p297 = pneg %p47
        $region50: #{tpu_custom_call.1} parent=47 // pred_check_branch
          %299 = sbr.rel (%p297) target = $region52
        $region51: #{tpu_custom_call.1} parent=47 // pred_region
          %300 = dma.done %s293, 256
        $region52: #{tpu_custom_call.1} parent=47 // pred_fallthru
          _
        // Predicated region
        $region53: #{tpu_custom_call.1} parent=47 // pred_check
          %p301 = pneg %p68
        $region54: #{tpu_custom_call.1} parent=47 // pred_check_branch
          %303 = sbr.rel (%p301) target = $region56
        $region55: #{tpu_custom_call.1} parent=47 // pred_region
          %304 = dma.done [#allocation8], 640
        $region56: #{tpu_custom_call.1} parent=47 // pred_fallthru
          _
        // Predicated region
        $region57: #{tpu_custom_call.1} parent=47 // pred_check
          %p305 = pneg %p110
        $region58: #{tpu_custom_call.1} parent=47 // pred_check_branch
          %307 = sbr.rel (%p305) target = $region60
        $region59: #{tpu_custom_call.1} parent=47 // pred_region
          %308 = dma.done [#allocation8], 896
        $region60: #{tpu_custom_call.1} parent=47 // pred_fallthru
          _
        // Predicated region
        $region61: #{tpu_custom_call.1} parent=47 // pred_check
          %p309 = pneg %p131
        $region62: #{tpu_custom_call.1} parent=47 // pred_check_branch
          %311 = sbr.rel (%p309) target = $region64
        $region63: #{tpu_custom_call.1} parent=47 // pred_region
          %312 = dma.done [#allocation11], 16
        $region64: #{tpu_custom_call.1} parent=47 // pred_fallthru
          _
        %s313 = sand.u32 %s34, 1
        %s314 = scalar_lea.sflag [#allocation5], %s313
        %s315 = sand.u32 %s34, 1
        %s316 = smul.addr %s315, 16
        %s317 = scalar_lea.vmem [#allocation4], %s316
        %p318 = pneg %p47
        %p319 = pneg %p44
        %p320 = pneg %p68
        %p321 = pneg %p65
        %p322 = pneg %p89
        %p323 = pneg %p86
        %p324 = pneg %p110
        %p325 = pneg %p107
        %p326 = pneg %p131
        %p327 = pneg %p128
        %p328 = pneg %p152
        %p329 = pneg %p149
        %p330 = pneg %p173
        %p331 = pneg %p170
        %p332 = pneg %p199
        %p333 = pneg %p196
        %s334 = sand.u32 %s186, 1
        %s335 = scalar_lea.sflag [#allocation6], %s334
        %s336 = sand.u32 %s186, 1
        %s337 = smul.addr %s336, 16
        %s338 = scalar_lea.vmem [#allocation12], %s337
        %vm339 = vcmask 517120
        %340 = vst.msk [vmem:[#allocation2] sm:$0x3] %vm339, 0.0
        %341 = vst.msk [vmem:[#allocation2 + $0x12] sm:$0x3] %vm339, 0.0
        %v342 = vld [vmem:[%s296] sm:$0xff]
        %v343 = vld [vmem:[%s296 + $0x8] sm:$0xff]
        %vm344 = vcmask 523264
        %345 = vst.msk [vmem:[#allocation2 + $0x2] sm:$0xff] %vm344, %v342
        %346 = vst.msk [vmem:[#allocation2 + $0xa] sm:$0xff] %vm344, %v343
        %v347 = vld [vmem:[#allocation7] sm:$0x1f]
        %v348 = vld [vmem:[#allocation7 + $0x8] sm:$0x1f]
        %v349 = vld [vmem:[#allocation7 + $0x10] sm:$0x1f]
        %v350 = vld [vmem:[#allocation7 + $0x18] sm:$0x1f]
        %v351 = vld [vmem:[#allocation7 + $0x20] sm:$0x1f]
        %v352 = vld [vmem:[%s2] sm:$0x1]
        %v354 = vlaneseq
        %v355 = vshrl.u32 %v354, 7
        %v356 = vsub.s32 0, %v355
        %v357 = vrot.slane %v352, %v356
        %v359 = vld [vmem:[#allocation2] sm:$0xff]
        %v360 = vld [vmem:[#allocation2 + $0x8] sm:$0xff]
        %vm361 = vcmask 1048064
        %362 = vrot.lane.b32.xlu0 %v359, 64
        %v363 = vpop.permute.xlu0 %362
        %v364 = vsel %vm361, %v363, %v359
        %365 = vrot.lane.b32.xlu0 %v360, 64
        %v366 = vpop.permute.xlu0 %365
        %v367 = vsel %vm361, %v366, %v360
        %368 = vrot.lane.b32.xlu0 %v364, 64
        %v369 = vpop.permute.xlu0 %368
        %370 = vrot.lane.b32.xlu0 %v367, 64
        %v371 = vpop.permute.xlu0 %370
        %v372 = vsel %vm361, %v369, %v359
        %v373 = vsel %vm361, %v371, %v360
        %v374 = vlaneseq
        %v375 = vshrl.u32 %v374, 7
        %v376 = vsub.s32 0, %v375
        %v377 = vrot.slane %v347, %v376
        %379 = vrot.lane.b32.xlu0 %v377, 56
        %v380 = vpop.permute.xlu0 %379
        %v382 = vmul.f32 %v372, %v380
        %v383 = vmul.f32 %v373, %v380
        %386 = vrot.lane.b32.xlu0 %v382, 72
        %v387 = vpop.permute.xlu0 %386
        %388 = vrot.lane.b32.xlu0 %v383, 72
        %v389 = vpop.permute.xlu0 %388
        %v392 = vadd.f32 %v357, %v387
        %v393 = vadd.f32 %v357, %v389
        %v394 = vlaneseq
        %v395 = vshrl.u32 %v394, 7
        %v396 = vsub.s32 1, %v395
        %v397 = vrot.slane %v347, %v396
        %399 = vrot.lane.b32.xlu0 %v397, 60
        %v400 = vpop.permute.xlu0 %399
        %v402 = vmul.f32 %v372, %v400
        %v403 = vmul.f32 %v373, %v400
        %406 = vrot.lane.b32.xlu0 %v402, 68
        %v407 = vpop.permute.xlu0 %406
        %408 = vrot.lane.b32.xlu0 %v403, 68
        %v409 = vpop.permute.xlu0 %408
        %v412 = vadd.f32 %v392, %v407
        %v413 = vadd.f32 %v393, %v409
        %v414 = vlaneseq
        %v415 = vshrl.u32 %v414, 7
        %v416 = vsub.s32 2, %v415
        %v417 = vrot.slane %v347, %v416
        %v418 = vmul.f32 %v359, %v417
        %v419 = vmul.f32 %v360, %v417
        %v420 = vadd.f32 %v412, %v418
        %v421 = vadd.f32 %v413, %v419
        %v422 = vlaneseq
        %v423 = vshrl.u32 %v422, 7
        %v424 = vsub.s32 3, %v423
        %v425 = vrot.slane %v347, %v424
        %427 = vrot.lane.b32.xlu0 %v425, 4
        %v428 = vpop.permute.xlu0 %427
        %v430 = vmul.f32 %v372, %v428
        %v431 = vmul.f32 %v373, %v428
        %434 = vrot.lane.b32.xlu0 %v430, 124
        %v435 = vpop.permute.xlu0 %434
        %436 = vrot.lane.b32.xlu0 %v431, 124
        %v437 = vpop.permute.xlu0 %436
        %v440 = vadd.f32 %v420, %v435
        %v441 = vadd.f32 %v421, %v437
        %v442 = vlaneseq
        %v443 = vshrl.u32 %v442, 7
        %v444 = vsub.s32 4, %v443
        %v445 = vrot.slane %v347, %v444
        %447 = vrot.lane.b32.xlu0 %v445, 8
        %v448 = vpop.permute.xlu0 %447
        %v450 = vmul.f32 %v372, %v448
        %v451 = vmul.f32 %v373, %v448
        %454 = vrot.lane.b32.xlu0 %v450, 120
        %v455 = vpop.permute.xlu0 %454
        %456 = vrot.lane.b32.xlu0 %v451, 120
        %v457 = vpop.permute.xlu0 %456
        %v460 = vadd.f32 %v440, %v455
        %v461 = vadd.f32 %v441, %v457
        %v462 = vld [vmem:[#allocation2 + $0x1] sm:$0xff]
        %v463 = vld [vmem:[#allocation2 + $0x9] sm:$0xff]
        %464 = vrot.lane.b32.xlu0 %v462, 64
        %v465 = vpop.permute.xlu0 %464
        %v466 = vsel %vm361, %v465, %v462
        %467 = vrot.lane.b32.xlu0 %v463, 64
        %v468 = vpop.permute.xlu0 %467
        %v469 = vsel %vm361, %v468, %v463
        %470 = vrot.lane.b32.xlu0 %v466, 64
        %v471 = vpop.permute.xlu0 %470
        %472 = vrot.lane.b32.xlu0 %v469, 64
        %v473 = vpop.permute.xlu0 %472
        %v474 = vsel %vm361, %v471, %v462
        %v475 = vsel %vm361, %v473, %v463
        %v476 = vlaneseq
        %v477 = vshrl.u32 %v476, 7
        %v478 = vsub.s32 0, %v477
        %v479 = vrot.slane %v348, %v478
        %481 = vrot.lane.b32.xlu0 %v479, 56
        %v482 = vpop.permute.xlu0 %481
        %v484 = vmul.f32 %v474, %v482
        %v485 = vmul.f32 %v475, %v482
        %488 = vrot.lane.b32.xlu0 %v484, 72
        %v489 = vpop.permute.xlu0 %488
        %490 = vrot.lane.b32.xlu0 %v485, 72
        %v491 = vpop.permute.xlu0 %490
        %v494 = vadd.f32 %v460, %v489
        %v495 = vadd.f32 %v461, %v491
        %v496 = vlaneseq
        %v497 = vshrl.u32 %v496, 7
        %v498 = vsub.s32 1, %v497
        %v499 = vrot.slane %v348, %v498
        %501 = vrot.lane.b32.xlu0 %v499, 60
        %v502 = vpop.permute.xlu0 %501
        %v504 = vmul.f32 %v474, %v502
        %v505 = vmul.f32 %v475, %v502
        %508 = vrot.lane.b32.xlu0 %v504, 68
        %v509 = vpop.permute.xlu0 %508
        %510 = vrot.lane.b32.xlu0 %v505, 68
        %v511 = vpop.permute.xlu0 %510
        %v514 = vadd.f32 %v494, %v509
        %v515 = vadd.f32 %v495, %v511
        %v516 = vlaneseq
        %v517 = vshrl.u32 %v516, 7
        %v518 = vsub.s32 2, %v517
        %v519 = vrot.slane %v348, %v518
        %v520 = vmul.f32 %v462, %v519
        %v521 = vmul.f32 %v463, %v519
        %v522 = vadd.f32 %v514, %v520
        %v523 = vadd.f32 %v515, %v521
        %v524 = vlaneseq
        %v525 = vshrl.u32 %v524, 7
        %v526 = vsub.s32 3, %v525
        %v527 = vrot.slane %v348, %v526
        %529 = vrot.lane.b32.xlu0 %v527, 4
        %v530 = vpop.permute.xlu0 %529
        %v532 = vmul.f32 %v474, %v530
        %v533 = vmul.f32 %v475, %v530
        %536 = vrot.lane.b32.xlu0 %v532, 124
        %v537 = vpop.permute.xlu0 %536
        %538 = vrot.lane.b32.xlu0 %v533, 124
        %v539 = vpop.permute.xlu0 %538
        %v542 = vadd.f32 %v522, %v537
        %v543 = vadd.f32 %v523, %v539
        %v544 = vlaneseq
        %v545 = vshrl.u32 %v544, 7
        %v546 = vsub.s32 4, %v545
        %v547 = vrot.slane %v348, %v546
        %549 = vrot.lane.b32.xlu0 %v547, 8
        %v550 = vpop.permute.xlu0 %549
        %v552 = vmul.f32 %v474, %v550
        %v553 = vmul.f32 %v475, %v550
        %556 = vrot.lane.b32.xlu0 %v552, 120
        %v557 = vpop.permute.xlu0 %556
        %558 = vrot.lane.b32.xlu0 %v553, 120
        %v559 = vpop.permute.xlu0 %558
        %v562 = vadd.f32 %v542, %v557
        %v563 = vadd.f32 %v543, %v559
        %v564 = vld [vmem:[#allocation2 + $0x2] sm:$0xff]
        %v565 = vld [vmem:[#allocation2 + $0xa] sm:$0xff]
        %566 = vrot.lane.b32.xlu0 %v564, 64
        %v567 = vpop.permute.xlu0 %566
        %v568 = vsel %vm361, %v567, %v564
        %569 = vrot.lane.b32.xlu0 %v565, 64
        %v570 = vpop.permute.xlu0 %569
        %v571 = vsel %vm361, %v570, %v565
        %572 = vrot.lane.b32.xlu0 %v568, 64
        %v573 = vpop.permute.xlu0 %572
        %574 = vrot.lane.b32.xlu0 %v571, 64
        %v575 = vpop.permute.xlu0 %574
        %v576 = vsel %vm361, %v573, %v564
        %v577 = vsel %vm361, %v575, %v565
        %v578 = vlaneseq
        %v579 = vshrl.u32 %v578, 7
        %v580 = vsub.s32 0, %v579
        %v581 = vrot.slane %v349, %v580
        %583 = vrot.lane.b32.xlu0 %v581, 56
        %v584 = vpop.permute.xlu0 %583
        %v586 = vmul.f32 %v576, %v584
        %v587 = vmul.f32 %v577, %v584
        %590 = vrot.lane.b32.xlu0 %v586, 72
        %v591 = vpop.permute.xlu0 %590
        %592 = vrot.lane.b32.xlu0 %v587, 72
        %v593 = vpop.permute.xlu0 %592
        %v596 = vadd.f32 %v562, %v591
        %v597 = vadd.f32 %v563, %v593
        %v598 = vlaneseq
        %v599 = vshrl.u32 %v598, 7
        %v600 = vsub.s32 1, %v599
        %v601 = vrot.slane %v349, %v600
        %603 = vrot.lane.b32.xlu0 %v601, 60
        %v604 = vpop.permute.xlu0 %603
        %v606 = vmul.f32 %v576, %v604
        %v607 = vmul.f32 %v577, %v604
        %610 = vrot.lane.b32.xlu0 %v606, 68
        %v611 = vpop.permute.xlu0 %610
        %612 = vrot.lane.b32.xlu0 %v607, 68
        %v613 = vpop.permute.xlu0 %612
        %v616 = vadd.f32 %v596, %v611
        %v617 = vadd.f32 %v597, %v613
        %v618 = vlaneseq
        %v619 = vshrl.u32 %v618, 7
        %v620 = vsub.s32 2, %v619
        %v621 = vrot.slane %v349, %v620
        %v622 = vmul.f32 %v564, %v621
        %v623 = vmul.f32 %v565, %v621
        %v624 = vadd.f32 %v616, %v622
        %v625 = vadd.f32 %v617, %v623
        %v626 = vlaneseq
        %v627 = vshrl.u32 %v626, 7
        %v628 = vsub.s32 3, %v627
        %v629 = vrot.slane %v349, %v628
        %631 = vrot.lane.b32.xlu0 %v629, 4
        %v632 = vpop.permute.xlu0 %631
        %v634 = vmul.f32 %v576, %v632
        %v635 = vmul.f32 %v577, %v632
        %638 = vrot.lane.b32.xlu0 %v634, 124
        %v639 = vpop.permute.xlu0 %638
        %640 = vrot.lane.b32.xlu0 %v635, 124
        %v641 = vpop.permute.xlu0 %640
        %v644 = vadd.f32 %v624, %v639
        %v645 = vadd.f32 %v625, %v641
        %v646 = vlaneseq
        %v647 = vshrl.u32 %v646, 7
        %v648 = vsub.s32 4, %v647
        %v649 = vrot.slane %v349, %v648
        %651 = vrot.lane.b32.xlu0 %v649, 8
        %v652 = vpop.permute.xlu0 %651
        %v654 = vmul.f32 %v576, %v652
        %v655 = vmul.f32 %v577, %v652
        %658 = vrot.lane.b32.xlu0 %v654, 120
        %v659 = vpop.permute.xlu0 %658
        %660 = vrot.lane.b32.xlu0 %v655, 120
        %v661 = vpop.permute.xlu0 %660
        %v664 = vadd.f32 %v644, %v659
        %v665 = vadd.f32 %v645, %v661
        %v666 = vld [vmem:[#allocation2 + $0x3] sm:$0xff]
        %v667 = vld [vmem:[#allocation2 + $0xb] sm:$0xff]
        %668 = vrot.lane.b32.xlu0 %v666, 64
        %v669 = vpop.permute.xlu0 %668
        %v670 = vsel %vm361, %v669, %v666
        %671 = vrot.lane.b32.xlu0 %v667, 64
        %v672 = vpop.permute.xlu0 %671
        %v673 = vsel %vm361, %v672, %v667
        %674 = vrot.lane.b32.xlu0 %v670, 64
        %v675 = vpop.permute.xlu0 %674
        %676 = vrot.lane.b32.xlu0 %v673, 64
        %v677 = vpop.permute.xlu0 %676
        %v678 = vsel %vm361, %v675, %v666
        %v679 = vsel %vm361, %v677, %v667
        %v680 = vlaneseq
        %v681 = vshrl.u32 %v680, 7
        %v682 = vsub.s32 0, %v681
        %v683 = vrot.slane %v350, %v682
        %685 = vrot.lane.b32.xlu0 %v683, 56
        %v686 = vpop.permute.xlu0 %685
        %v688 = vmul.f32 %v678, %v686
        %v689 = vmul.f32 %v679, %v686
        %692 = vrot.lane.b32.xlu0 %v688, 72
        %v693 = vpop.permute.xlu0 %692
        %694 = vrot.lane.b32.xlu0 %v689, 72
        %v695 = vpop.permute.xlu0 %694
        %v698 = vadd.f32 %v664, %v693
        %v699 = vadd.f32 %v665, %v695
        %v700 = vlaneseq
        %v701 = vshrl.u32 %v700, 7
        %v702 = vsub.s32 1, %v701
        %v703 = vrot.slane %v350, %v702
        %705 = vrot.lane.b32.xlu0 %v703, 60
        %v706 = vpop.permute.xlu0 %705
        %v708 = vmul.f32 %v678, %v706
        %v709 = vmul.f32 %v679, %v706
        %712 = vrot.lane.b32.xlu0 %v708, 68
        %v713 = vpop.permute.xlu0 %712
        %714 = vrot.lane.b32.xlu0 %v709, 68
        %v715 = vpop.permute.xlu0 %714
        %v718 = vadd.f32 %v698, %v713
        %v719 = vadd.f32 %v699, %v715
        %v720 = vlaneseq
        %v721 = vshrl.u32 %v720, 7
        %v722 = vsub.s32 2, %v721
        %v723 = vrot.slane %v350, %v722
        %v724 = vmul.f32 %v666, %v723
        %v725 = vmul.f32 %v667, %v723
        %v726 = vadd.f32 %v718, %v724
        %v727 = vadd.f32 %v719, %v725
        %v728 = vlaneseq
        %v729 = vshrl.u32 %v728, 7
        %v730 = vsub.s32 3, %v729
        %v731 = vrot.slane %v350, %v730
        %733 = vrot.lane.b32.xlu0 %v731, 4
        %v734 = vpop.permute.xlu0 %733
        %v736 = vmul.f32 %v678, %v734
        %v737 = vmul.f32 %v679, %v734
        %740 = vrot.lane.b32.xlu0 %v736, 124
        %v741 = vpop.permute.xlu0 %740
        %742 = vrot.lane.b32.xlu0 %v737, 124
        %v743 = vpop.permute.xlu0 %742
        %v746 = vadd.f32 %v726, %v741
        %v747 = vadd.f32 %v727, %v743
        %v748 = vlaneseq
        %v749 = vshrl.u32 %v748, 7
        %v750 = vsub.s32 4, %v749
        %v751 = vrot.slane %v350, %v750
        %753 = vrot.lane.b32.xlu0 %v751, 8
        %v754 = vpop.permute.xlu0 %753
        %v756 = vmul.f32 %v678, %v754
        %v757 = vmul.f32 %v679, %v754
        %760 = vrot.lane.b32.xlu0 %v756, 120
        %v761 = vpop.permute.xlu0 %760
        %762 = vrot.lane.b32.xlu0 %v757, 120
        %v763 = vpop.permute.xlu0 %762
        %v766 = vadd.f32 %v746, %v761
        %v767 = vadd.f32 %v747, %v763
        %v768 = vld [vmem:[#allocation2 + $0x4] sm:$0xff]
        %v769 = vld [vmem:[#allocation2 + $0xc] sm:$0xff]
        %770 = vrot.lane.b32.xlu0 %v768, 64
        %v771 = vpop.permute.xlu0 %770
        %v772 = vsel %vm361, %v771, %v768
        %773 = vrot.lane.b32.xlu0 %v769, 64
        %v774 = vpop.permute.xlu0 %773
        %v775 = vsel %vm361, %v774, %v769
        %776 = vrot.lane.b32.xlu0 %v772, 64
        %v777 = vpop.permute.xlu0 %776
        %778 = vrot.lane.b32.xlu0 %v775, 64
        %v779 = vpop.permute.xlu0 %778
        %v780 = vsel %vm361, %v777, %v768
        %v781 = vsel %vm361, %v779, %v769
        %v782 = vlaneseq
        %v783 = vshrl.u32 %v782, 7
        %v784 = vsub.s32 0, %v783
        %v785 = vrot.slane %v351, %v784
        %787 = vrot.lane.b32.xlu0 %v785, 56
        %v788 = vpop.permute.xlu0 %787
        %v790 = vmul.f32 %v780, %v788
        %v791 = vmul.f32 %v781, %v788
        %794 = vrot.lane.b32.xlu0 %v790, 72
        %v795 = vpop.permute.xlu0 %794
        %796 = vrot.lane.b32.xlu0 %v791, 72
        %v797 = vpop.permute.xlu0 %796
        %v800 = vadd.f32 %v766, %v795
        %v801 = vadd.f32 %v767, %v797
        %v802 = vlaneseq
        %v803 = vshrl.u32 %v802, 7
        %v804 = vsub.s32 1, %v803
        %v805 = vrot.slane %v351, %v804
        %807 = vrot.lane.b32.xlu0 %v805, 60
        %v808 = vpop.permute.xlu0 %807
        %v810 = vmul.f32 %v780, %v808
        %v811 = vmul.f32 %v781, %v808
        %814 = vrot.lane.b32.xlu0 %v810, 68
        %v815 = vpop.permute.xlu0 %814
        %816 = vrot.lane.b32.xlu0 %v811, 68
        %v817 = vpop.permute.xlu0 %816
        %v820 = vadd.f32 %v800, %v815
        %v821 = vadd.f32 %v801, %v817
        %v822 = vlaneseq
        %v823 = vshrl.u32 %v822, 7
        %v824 = vsub.s32 2, %v823
        %v825 = vrot.slane %v351, %v824
        %v826 = vmul.f32 %v768, %v825
        %v827 = vmul.f32 %v769, %v825
        %v828 = vadd.f32 %v820, %v826
        %v829 = vadd.f32 %v821, %v827
        %v830 = vlaneseq
        %v831 = vshrl.u32 %v830, 7
        %v832 = vsub.s32 3, %v831
        %v833 = vrot.slane %v351, %v832
        %835 = vrot.lane.b32.xlu0 %v833, 4
        %v836 = vpop.permute.xlu0 %835
        %v838 = vmul.f32 %v780, %v836
        %v839 = vmul.f32 %v781, %v836
        %842 = vrot.lane.b32.xlu0 %v838, 124
        %v843 = vpop.permute.xlu0 %842
        %844 = vrot.lane.b32.xlu0 %v839, 124
        %v845 = vpop.permute.xlu0 %844
        %v848 = vadd.f32 %v828, %v843
        %v849 = vadd.f32 %v829, %v845
        %v850 = vlaneseq
        %v851 = vshrl.u32 %v850, 7
        %v852 = vsub.s32 4, %v851
        %v853 = vrot.slane %v351, %v852
        %855 = vrot.lane.b32.xlu0 %v853, 8
        %v856 = vpop.permute.xlu0 %855
        %v858 = vmul.f32 %v780, %v856
        %v859 = vmul.f32 %v781, %v856
        %862 = vrot.lane.b32.xlu0 %v858, 120
        %v863 = vpop.permute.xlu0 %862
        %864 = vrot.lane.b32.xlu0 %v859, 120
        %v865 = vpop.permute.xlu0 %864
        %v868 = vadd.f32 %v848, %v863
        %v869 = vadd.f32 %v849, %v865
        %870 = vst.msk [vmem:[#allocation3] sm:$0xff] %vm344, 0.0
        %vm871 = vcmask 516096
        %872 = vst.msk [vmem:[#allocation3 + $0x8] sm:$0x1] %vm871, 0.0
        %873 = vst.msk [vmem:[#allocation3 + $0x19] sm:$0xff] %vm344, 0.0
        %874 = vst.msk [vmem:[#allocation3 + $0x21] sm:$0x1] %vm871, 0.0
        %875 = vst.msk [vmem:[#allocation3 + $0x9] sm:$0xff] %vm344, %v868
        %876 = vst.msk [vmem:[#allocation3 + $0x11] sm:$0xff] %vm344, %v869
        %v877 = vld [vmem:[#allocation9] sm:$0x7f]
        %v878 = vld [vmem:[#allocation9 + $0x8] sm:$0x7f]
        %v879 = vld [vmem:[#allocation9 + $0x10] sm:$0x7f]
        %v880 = vld [vmem:[#allocation9 + $0x18] sm:$0x7f]
        %v881 = vld [vmem:[#allocation9 + $0x20] sm:$0x7f]
        %v882 = vld [vmem:[#allocation9 + $0x28] sm:$0x7f]
        %v883 = vld [vmem:[#allocation9 + $0x30] sm:$0x7f]
        %v884 = vld [vmem:[#allocation10] sm:$0x1]
        %v886 = vlaneseq
        %v887 = vshrl.u32 %v886, 7
        %v888 = vsub.s32 0, %v887
        %v889 = vrot.slane %v884, %v888
        %v891 = vld [vmem:[#allocation3] sm:$0xff]
        %v892 = vld [vmem:[#allocation3 + $0x8] sm:$0xff]
        %893 = vrot.lane.b32.xlu0 %v891, 64
        %v894 = vpop.permute.xlu0 %893
        %v895 = vsel %vm361, %v894, %v891
        %896 = vrot.lane.b32.xlu0 %v892, 64
        %v897 = vpop.permute.xlu0 %896
        %v898 = vsel %vm361, %v897, %v892
        %899 = vrot.lane.b32.xlu0 %v895, 64
        %v900 = vpop.permute.xlu0 %899
        %901 = vrot.lane.b32.xlu0 %v898, 64
        %v902 = vpop.permute.xlu0 %901
        %v903 = vsel %vm361, %v900, %v891
        %v904 = vsel %vm361, %v902, %v892
        %v905 = vlaneseq
        %v906 = vshrl.u32 %v905, 7
        %v907 = vsub.s32 0, %v906
        %v908 = vrot.slane %v877, %v907
        %910 = vrot.lane.b32.xlu0 %v908, 28
        %v911 = vpop.permute.xlu0 %910
        %v913 = vmul.f32 %v903, %v911
        %v914 = vmul.f32 %v904, %v911
        %917 = vrot.lane.b32.xlu0 %v913, 100
        %v918 = vpop.permute.xlu0 %917
        %919 = vrot.lane.b32.xlu0 %v914, 100
        %v920 = vpop.permute.xlu0 %919
        %v923 = vadd.f32 %v889, %v918
        %v924 = vadd.f32 %v889, %v920
        %v925 = vlaneseq
        %v926 = vshrl.u32 %v925, 7
        %v927 = vsub.s32 1, %v926
        %v928 = vrot.slane %v877, %v927
        %930 = vrot.lane.b32.xlu0 %v928, 40
        %v931 = vpop.permute.xlu0 %930
        %v933 = vmul.f32 %v903, %v931
        %v934 = vmul.f32 %v904, %v931
        %937 = vrot.lane.b32.xlu0 %v933, 88
        %v938 = vpop.permute.xlu0 %937
        %939 = vrot.lane.b32.xlu0 %v934, 88
        %v940 = vpop.permute.xlu0 %939
        %v943 = vadd.f32 %v923, %v938
        %v944 = vadd.f32 %v924, %v940
        %v945 = vlaneseq
        %v946 = vshrl.u32 %v945, 7
        %v947 = vsub.s32 2, %v946
        %v948 = vrot.slane %v877, %v947
        %950 = vrot.lane.b32.xlu0 %v948, 52
        %v951 = vpop.permute.xlu0 %950
        %v953 = vmul.f32 %v903, %v951
        %v954 = vmul.f32 %v904, %v951
        %957 = vrot.lane.b32.xlu0 %v953, 76
        %v958 = vpop.permute.xlu0 %957
        %959 = vrot.lane.b32.xlu0 %v954, 76
        %v960 = vpop.permute.xlu0 %959
        %v963 = vadd.f32 %v943, %v958
        %v964 = vadd.f32 %v944, %v960
        %v965 = vlaneseq
        %v966 = vshrl.u32 %v965, 7
        %v967 = vsub.s32 3, %v966
        %v968 = vrot.slane %v877, %v967
        %v969 = vmul.f32 %v891, %v968
        %v970 = vmul.f32 %v892, %v968
        %v971 = vadd.f32 %v963, %v969
        %v972 = vadd.f32 %v964, %v970
        %v973 = vlaneseq
        %v974 = vshrl.u32 %v973, 7
        %v975 = vsub.s32 4, %v974
        %v976 = vrot.slane %v877, %v975
        %978 = vrot.lane.b32.xlu0 %v976, 12
        %v979 = vpop.permute.xlu0 %978
        %v981 = vmul.f32 %v903, %v979
        %v982 = vmul.f32 %v904, %v979
        %985 = vrot.lane.b32.xlu0 %v981, 116
        %v986 = vpop.permute.xlu0 %985
        %987 = vrot.lane.b32.xlu0 %v982, 116
        %v988 = vpop.permute.xlu0 %987
        %v991 = vadd.f32 %v971, %v986
        %v992 = vadd.f32 %v972, %v988
        %v993 = vlaneseq
        %v994 = vshrl.u32 %v993, 7
        %v995 = vsub.s32 5, %v994
        %v996 = vrot.slane %v877, %v995
        %998 = vrot.lane.b32.xlu0 %v996, 24
        %v999 = vpop.permute.xlu0 %998
        %v1001 = vmul.f32 %v903, %v999
        %v1002 = vmul.f32 %v904, %v999
        %1005 = vrot.lane.b32.xlu0 %v1001, 104
        %v1006 = vpop.permute.xlu0 %1005
        %1007 = vrot.lane.b32.xlu0 %v1002, 104
        %v1008 = vpop.permute.xlu0 %1007
        %v1011 = vadd.f32 %v991, %v1006
        %v1012 = vadd.f32 %v992, %v1008
        %v1013 = vlaneseq
        %v1014 = vshrl.u32 %v1013, 7
        %v1015 = vsub.s32 6, %v1014
        %v1016 = vrot.slane %v877, %v1015
        %1018 = vrot.lane.b32.xlu0 %v1016, 36
        %v1019 = vpop.permute.xlu0 %1018
        %v1021 = vmul.f32 %v903, %v1019
        %v1022 = vmul.f32 %v904, %v1019
        %1025 = vrot.lane.b32.xlu0 %v1021, 92
        %v1026 = vpop.permute.xlu0 %1025
        %1027 = vrot.lane.b32.xlu0 %v1022, 92
        %v1028 = vpop.permute.xlu0 %1027
        %v1031 = vadd.f32 %v1011, %v1026
        %v1032 = vadd.f32 %v1012, %v1028
        %v1033 = vld [vmem:[#allocation3 + $0x3] sm:$0xff]
        %v1034 = vld [vmem:[#allocation3 + $0xb] sm:$0xff]
        %1035 = vrot.lane.b32.xlu0 %v1033, 64
        %v1036 = vpop.permute.xlu0 %1035
        %v1037 = vsel %vm361, %v1036, %v1033
        %1038 = vrot.lane.b32.xlu0 %v1034, 64
        %v1039 = vpop.permute.xlu0 %1038
        %v1040 = vsel %vm361, %v1039, %v1034
        %1041 = vrot.lane.b32.xlu0 %v1037, 64
        %v1042 = vpop.permute.xlu0 %1041
        %1043 = vrot.lane.b32.xlu0 %v1040, 64
        %v1044 = vpop.permute.xlu0 %1043
        %v1045 = vsel %vm361, %v1042, %v1033
        %v1046 = vsel %vm361, %v1044, %v1034
        %v1047 = vlaneseq
        %v1048 = vshrl.u32 %v1047, 7
        %v1049 = vsub.s32 0, %v1048
        %v1050 = vrot.slane %v878, %v1049
        %1052 = vrot.lane.b32.xlu0 %v1050, 28
        %v1053 = vpop.permute.xlu0 %1052
        %v1055 = vmul.f32 %v1045, %v1053
        %v1056 = vmul.f32 %v1046, %v1053
        %1059 = vrot.lane.b32.xlu0 %v1055, 100
        %v1060 = vpop.permute.xlu0 %1059
        %1061 = vrot.lane.b32.xlu0 %v1056, 100
        %v1062 = vpop.permute.xlu0 %1061
        %v1065 = vadd.f32 %v1031, %v1060
        %v1066 = vadd.f32 %v1032, %v1062
        %v1067 = vlaneseq
        %v1068 = vshrl.u32 %v1067, 7
        %v1069 = vsub.s32 1, %v1068
        %v1070 = vrot.slane %v878, %v1069
        %1072 = vrot.lane.b32.xlu0 %v1070, 40
        %v1073 = vpop.permute.xlu0 %1072
        %v1075 = vmul.f32 %v1045, %v1073
        %v1076 = vmul.f32 %v1046, %v1073
        %1079 = vrot.lane.b32.xlu0 %v1075, 88
        %v1080 = vpop.permute.xlu0 %1079
        %1081 = vrot.lane.b32.xlu0 %v1076, 88
        %v1082 = vpop.permute.xlu0 %1081
        %v1085 = vadd.f32 %v1065, %v1080
        %v1086 = vadd.f32 %v1066, %v1082
        %v1087 = vlaneseq
        %v1088 = vshrl.u32 %v1087, 7
        %v1089 = vsub.s32 2, %v1088
        %v1090 = vrot.slane %v878, %v1089
        %1092 = vrot.lane.b32.xlu0 %v1090, 52
        %v1093 = vpop.permute.xlu0 %1092
        %v1095 = vmul.f32 %v1045, %v1093
        %v1096 = vmul.f32 %v1046, %v1093
        %1099 = vrot.lane.b32.xlu0 %v1095, 76
        %v1100 = vpop.permute.xlu0 %1099
        %1101 = vrot.lane.b32.xlu0 %v1096, 76
        %v1102 = vpop.permute.xlu0 %1101
        %v1105 = vadd.f32 %v1085, %v1100
        %v1106 = vadd.f32 %v1086, %v1102
        %v1107 = vlaneseq
        %v1108 = vshrl.u32 %v1107, 7
        %v1109 = vsub.s32 3, %v1108
        %v1110 = vrot.slane %v878, %v1109
        %v1111 = vmul.f32 %v1033, %v1110
        %v1112 = vmul.f32 %v1034, %v1110
        %v1113 = vadd.f32 %v1105, %v1111
        %v1114 = vadd.f32 %v1106, %v1112
        %v1115 = vlaneseq
        %v1116 = vshrl.u32 %v1115, 7
        %v1117 = vsub.s32 4, %v1116
        %v1118 = vrot.slane %v878, %v1117
        %1120 = vrot.lane.b32.xlu0 %v1118, 12
        %v1121 = vpop.permute.xlu0 %1120
        %v1123 = vmul.f32 %v1045, %v1121
        %v1124 = vmul.f32 %v1046, %v1121
        %1127 = vrot.lane.b32.xlu0 %v1123, 116
        %v1128 = vpop.permute.xlu0 %1127
        %1129 = vrot.lane.b32.xlu0 %v1124, 116
        %v1130 = vpop.permute.xlu0 %1129
        %v1133 = vadd.f32 %v1113, %v1128
        %v1134 = vadd.f32 %v1114, %v1130
        %v1135 = vlaneseq
        %v1136 = vshrl.u32 %v1135, 7
        %v1137 = vsub.s32 5, %v1136
        %v1138 = vrot.slane %v878, %v1137
        %1140 = vrot.lane.b32.xlu0 %v1138, 24
        %v1141 = vpop.permute.xlu0 %1140
        %v1143 = vmul.f32 %v1045, %v1141
        %v1144 = vmul.f32 %v1046, %v1141
        %1147 = vrot.lane.b32.xlu0 %v1143, 104
        %v1148 = vpop.permute.xlu0 %1147
        %1149 = vrot.lane.b32.xlu0 %v1144, 104
        %v1150 = vpop.permute.xlu0 %1149
        %v1153 = vadd.f32 %v1133, %v1148
        %v1154 = vadd.f32 %v1134, %v1150
        %v1155 = vlaneseq
        %v1156 = vshrl.u32 %v1155, 7
        %v1157 = vsub.s32 6, %v1156
        %v1158 = vrot.slane %v878, %v1157
        %1160 = vrot.lane.b32.xlu0 %v1158, 36
        %v1161 = vpop.permute.xlu0 %1160
        %v1163 = vmul.f32 %v1045, %v1161
        %v1164 = vmul.f32 %v1046, %v1161
        %1167 = vrot.lane.b32.xlu0 %v1163, 92
        %v1168 = vpop.permute.xlu0 %1167
        %1169 = vrot.lane.b32.xlu0 %v1164, 92
        %v1170 = vpop.permute.xlu0 %1169
        %v1173 = vadd.f32 %v1153, %v1168
        %v1174 = vadd.f32 %v1154, %v1170
        %v1175 = vld [vmem:[#allocation3 + $0x6] sm:$0xff]
        %v1176 = vld [vmem:[#allocation3 + $0xe] sm:$0xff]
        %1177 = vrot.lane.b32.xlu0 %v1175, 64
        %v1178 = vpop.permute.xlu0 %1177
        %v1179 = vsel %vm361, %v1178, %v1175
        %1180 = vrot.lane.b32.xlu0 %v1176, 64
        %v1181 = vpop.permute.xlu0 %1180
        %v1182 = vsel %vm361, %v1181, %v1176
        %1183 = vrot.lane.b32.xlu0 %v1179, 64
        %v1184 = vpop.permute.xlu0 %1183
        %1185 = vrot.lane.b32.xlu0 %v1182, 64
        %v1186 = vpop.permute.xlu0 %1185
        %v1187 = vsel %vm361, %v1184, %v1175
        %v1188 = vsel %vm361, %v1186, %v1176
        %v1189 = vlaneseq
        %v1190 = vshrl.u32 %v1189, 7
        %v1191 = vsub.s32 0, %v1190
        %v1192 = vrot.slane %v879, %v1191
        %1194 = vrot.lane.b32.xlu0 %v1192, 28
        %v1195 = vpop.permute.xlu0 %1194
        %v1197 = vmul.f32 %v1187, %v1195
        %v1198 = vmul.f32 %v1188, %v1195
        %1201 = vrot.lane.b32.xlu0 %v1197, 100
        %v1202 = vpop.permute.xlu0 %1201
        %1203 = vrot.lane.b32.xlu0 %v1198, 100
        %v1204 = vpop.permute.xlu0 %1203
        %v1207 = vadd.f32 %v1173, %v1202
        %v1208 = vadd.f32 %v1174, %v1204
        %v1209 = vlaneseq
        %v1210 = vshrl.u32 %v1209, 7
        %v1211 = vsub.s32 1, %v1210
        %v1212 = vrot.slane %v879, %v1211
        %1214 = vrot.lane.b32.xlu0 %v1212, 40
        %v1215 = vpop.permute.xlu0 %1214
        %v1217 = vmul.f32 %v1187, %v1215
        %v1218 = vmul.f32 %v1188, %v1215
        %1221 = vrot.lane.b32.xlu0 %v1217, 88
        %v1222 = vpop.permute.xlu0 %1221
        %1223 = vrot.lane.b32.xlu0 %v1218, 88
        %v1224 = vpop.permute.xlu0 %1223
        %v1227 = vadd.f32 %v1207, %v1222
        %v1228 = vadd.f32 %v1208, %v1224
        %v1229 = vlaneseq
        %v1230 = vshrl.u32 %v1229, 7
        %v1231 = vsub.s32 2, %v1230
        %v1232 = vrot.slane %v879, %v1231
        %1234 = vrot.lane.b32.xlu0 %v1232, 52
        %v1235 = vpop.permute.xlu0 %1234
        %v1237 = vmul.f32 %v1187, %v1235
        %v1238 = vmul.f32 %v1188, %v1235
        %1241 = vrot.lane.b32.xlu0 %v1237, 76
        %v1242 = vpop.permute.xlu0 %1241
        %1243 = vrot.lane.b32.xlu0 %v1238, 76
        %v1244 = vpop.permute.xlu0 %1243
        %v1247 = vadd.f32 %v1227, %v1242
        %v1248 = vadd.f32 %v1228, %v1244
        %v1249 = vlaneseq
        %v1250 = vshrl.u32 %v1249, 7
        %v1251 = vsub.s32 3, %v1250
        %v1252 = vrot.slane %v879, %v1251
        %v1253 = vmul.f32 %v1175, %v1252
        %v1254 = vmul.f32 %v1176, %v1252
        %v1255 = vadd.f32 %v1247, %v1253
        %v1256 = vadd.f32 %v1248, %v1254
        %v1257 = vlaneseq
        %v1258 = vshrl.u32 %v1257, 7
        %v1259 = vsub.s32 4, %v1258
        %v1260 = vrot.slane %v879, %v1259
        %1262 = vrot.lane.b32.xlu0 %v1260, 12
        %v1263 = vpop.permute.xlu0 %1262
        %v1265 = vmul.f32 %v1187, %v1263
        %v1266 = vmul.f32 %v1188, %v1263
        %1269 = vrot.lane.b32.xlu0 %v1265, 116
        %v1270 = vpop.permute.xlu0 %1269
        %1271 = vrot.lane.b32.xlu0 %v1266, 116
        %v1272 = vpop.permute.xlu0 %1271
        %v1275 = vadd.f32 %v1255, %v1270
        %v1276 = vadd.f32 %v1256, %v1272
        %v1277 = vlaneseq
        %v1278 = vshrl.u32 %v1277, 7
        %v1279 = vsub.s32 5, %v1278
        %v1280 = vrot.slane %v879, %v1279
        %1282 = vrot.lane.b32.xlu0 %v1280, 24
        %v1283 = vpop.permute.xlu0 %1282
        %v1285 = vmul.f32 %v1187, %v1283
        %v1286 = vmul.f32 %v1188, %v1283
        %1289 = vrot.lane.b32.xlu0 %v1285, 104
        %v1290 = vpop.permute.xlu0 %1289
        %1291 = vrot.lane.b32.xlu0 %v1286, 104
        %v1292 = vpop.permute.xlu0 %1291
        %v1295 = vadd.f32 %v1275, %v1290
        %v1296 = vadd.f32 %v1276, %v1292
        %v1297 = vlaneseq
        %v1298 = vshrl.u32 %v1297, 7
        %v1299 = vsub.s32 6, %v1298
        %v1300 = vrot.slane %v879, %v1299
        %1302 = vrot.lane.b32.xlu0 %v1300, 36
        %v1303 = vpop.permute.xlu0 %1302
        %v1305 = vmul.f32 %v1187, %v1303
        %v1306 = vmul.f32 %v1188, %v1303
        %1309 = vrot.lane.b32.xlu0 %v1305, 92
        %v1310 = vpop.permute.xlu0 %1309
        %1311 = vrot.lane.b32.xlu0 %v1306, 92
        %v1312 = vpop.permute.xlu0 %1311
        %v1315 = vadd.f32 %v1295, %v1310
        %v1316 = vadd.f32 %v1296, %v1312
        %v1317 = vld [vmem:[#allocation3 + $0x9] sm:$0xff]
        %v1318 = vld [vmem:[#allocation3 + $0x11] sm:$0xff]
        %1319 = vrot.lane.b32.xlu0 %v1317, 64
        %v1320 = vpop.permute.xlu0 %1319
        %v1321 = vsel %vm361, %v1320, %v1317
        %1322 = vrot.lane.b32.xlu0 %v1318, 64
        %v1323 = vpop.permute.xlu0 %1322
        %v1324 = vsel %vm361, %v1323, %v1318
        %1325 = vrot.lane.b32.xlu0 %v1321, 64
        %v1326 = vpop.permute.xlu0 %1325
        %1327 = vrot.lane.b32.xlu0 %v1324, 64
        %v1328 = vpop.permute.xlu0 %1327
        %v1329 = vsel %vm361, %v1326, %v1317
        %v1330 = vsel %vm361, %v1328, %v1318
        %v1331 = vlaneseq
        %v1332 = vshrl.u32 %v1331, 7
        %v1333 = vsub.s32 0, %v1332
        %v1334 = vrot.slane %v880, %v1333
        %1336 = vrot.lane.b32.xlu0 %v1334, 28
        %v1337 = vpop.permute.xlu0 %1336
        %v1339 = vmul.f32 %v1329, %v1337
        %v1340 = vmul.f32 %v1330, %v1337
        %1343 = vrot.lane.b32.xlu0 %v1339, 100
        %v1344 = vpop.permute.xlu0 %1343
        %1345 = vrot.lane.b32.xlu0 %v1340, 100
        %v1346 = vpop.permute.xlu0 %1345
        %v1349 = vadd.f32 %v1315, %v1344
        %v1350 = vadd.f32 %v1316, %v1346
        %v1351 = vlaneseq
        %v1352 = vshrl.u32 %v1351, 7
        %v1353 = vsub.s32 1, %v1352
        %v1354 = vrot.slane %v880, %v1353
        %1356 = vrot.lane.b32.xlu0 %v1354, 40
        %v1357 = vpop.permute.xlu0 %1356
        %v1359 = vmul.f32 %v1329, %v1357
        %v1360 = vmul.f32 %v1330, %v1357
        %1363 = vrot.lane.b32.xlu0 %v1359, 88
        %v1364 = vpop.permute.xlu0 %1363
        %1365 = vrot.lane.b32.xlu0 %v1360, 88
        %v1366 = vpop.permute.xlu0 %1365
        %v1369 = vadd.f32 %v1349, %v1364
        %v1370 = vadd.f32 %v1350, %v1366
        %v1371 = vlaneseq
        %v1372 = vshrl.u32 %v1371, 7
        %v1373 = vsub.s32 2, %v1372
        %v1374 = vrot.slane %v880, %v1373
        %1376 = vrot.lane.b32.xlu0 %v1374, 52
        %v1377 = vpop.permute.xlu0 %1376
        %v1379 = vmul.f32 %v1329, %v1377
        %v1380 = vmul.f32 %v1330, %v1377
        %1383 = vrot.lane.b32.xlu0 %v1379, 76
        %v1384 = vpop.permute.xlu0 %1383
        %1385 = vrot.lane.b32.xlu0 %v1380, 76
        %v1386 = vpop.permute.xlu0 %1385
        %v1389 = vadd.f32 %v1369, %v1384
        %v1390 = vadd.f32 %v1370, %v1386
        %v1391 = vlaneseq
        %v1392 = vshrl.u32 %v1391, 7
        %v1393 = vsub.s32 3, %v1392
        %v1394 = vrot.slane %v880, %v1393
        %v1395 = vmul.f32 %v1317, %v1394
        %v1396 = vmul.f32 %v1318, %v1394
        %v1397 = vadd.f32 %v1389, %v1395
        %v1398 = vadd.f32 %v1390, %v1396
        %v1399 = vlaneseq
        %v1400 = vshrl.u32 %v1399, 7
        %v1401 = vsub.s32 4, %v1400
        %v1402 = vrot.slane %v880, %v1401
        %1404 = vrot.lane.b32.xlu0 %v1402, 12
        %v1405 = vpop.permute.xlu0 %1404
        %v1407 = vmul.f32 %v1329, %v1405
        %v1408 = vmul.f32 %v1330, %v1405
        %1411 = vrot.lane.b32.xlu0 %v1407, 116
        %v1412 = vpop.permute.xlu0 %1411
        %1413 = vrot.lane.b32.xlu0 %v1408, 116
        %v1414 = vpop.permute.xlu0 %1413
        %v1417 = vadd.f32 %v1397, %v1412
        %v1418 = vadd.f32 %v1398, %v1414
        %v1419 = vlaneseq
        %v1420 = vshrl.u32 %v1419, 7
        %v1421 = vsub.s32 5, %v1420
        %v1422 = vrot.slane %v880, %v1421
        %1424 = vrot.lane.b32.xlu0 %v1422, 24
        %v1425 = vpop.permute.xlu0 %1424
        %v1427 = vmul.f32 %v1329, %v1425
        %v1428 = vmul.f32 %v1330, %v1425
        %1431 = vrot.lane.b32.xlu0 %v1427, 104
        %v1432 = vpop.permute.xlu0 %1431
        %1433 = vrot.lane.b32.xlu0 %v1428, 104
        %v1434 = vpop.permute.xlu0 %1433
        %v1437 = vadd.f32 %v1417, %v1432
        %v1438 = vadd.f32 %v1418, %v1434
        %v1439 = vlaneseq
        %v1440 = vshrl.u32 %v1439, 7
        %v1441 = vsub.s32 6, %v1440
        %v1442 = vrot.slane %v880, %v1441
        %1444 = vrot.lane.b32.xlu0 %v1442, 36
        %v1445 = vpop.permute.xlu0 %1444
        %v1447 = vmul.f32 %v1329, %v1445
        %v1448 = vmul.f32 %v1330, %v1445
        %1451 = vrot.lane.b32.xlu0 %v1447, 92
        %v1452 = vpop.permute.xlu0 %1451
        %1453 = vrot.lane.b32.xlu0 %v1448, 92
        %v1454 = vpop.permute.xlu0 %1453
        %v1457 = vadd.f32 %v1437, %v1452
        %v1458 = vadd.f32 %v1438, %v1454
        %v1459 = vld [vmem:[#allocation3 + $0xc] sm:$0xff]
        %v1460 = vld [vmem:[#allocation3 + $0x14] sm:$0xff]
        %1461 = vrot.lane.b32.xlu0 %v1459, 64
        %v1462 = vpop.permute.xlu0 %1461
        %v1463 = vsel %vm361, %v1462, %v1459
        %1464 = vrot.lane.b32.xlu0 %v1460, 64
        %v1465 = vpop.permute.xlu0 %1464
        %v1466 = vsel %vm361, %v1465, %v1460
        %1467 = vrot.lane.b32.xlu0 %v1463, 64
        %v1468 = vpop.permute.xlu0 %1467
        %1469 = vrot.lane.b32.xlu0 %v1466, 64
        %v1470 = vpop.permute.xlu0 %1469
        %v1471 = vsel %vm361, %v1468, %v1459
        %v1472 = vsel %vm361, %v1470, %v1460
        %v1473 = vlaneseq
        %v1474 = vshrl.u32 %v1473, 7
        %v1475 = vsub.s32 0, %v1474
        %v1476 = vrot.slane %v881, %v1475
        %1478 = vrot.lane.b32.xlu0 %v1476, 28
        %v1479 = vpop.permute.xlu0 %1478
        %v1481 = vmul.f32 %v1471, %v1479
        %v1482 = vmul.f32 %v1472, %v1479
        %1485 = vrot.lane.b32.xlu0 %v1481, 100
        %v1486 = vpop.permute.xlu0 %1485
        %1487 = vrot.lane.b32.xlu0 %v1482, 100
        %v1488 = vpop.permute.xlu0 %1487
        %v1491 = vadd.f32 %v1457, %v1486
        %v1492 = vadd.f32 %v1458, %v1488
        %v1493 = vlaneseq
        %v1494 = vshrl.u32 %v1493, 7
        %v1495 = vsub.s32 1, %v1494
        %v1496 = vrot.slane %v881, %v1495
        %1498 = vrot.lane.b32.xlu0 %v1496, 40
        %v1499 = vpop.permute.xlu0 %1498
        %v1501 = vmul.f32 %v1471, %v1499
        %v1502 = vmul.f32 %v1472, %v1499
        %1505 = vrot.lane.b32.xlu0 %v1501, 88
        %v1506 = vpop.permute.xlu0 %1505
        %1507 = vrot.lane.b32.xlu0 %v1502, 88
        %v1508 = vpop.permute.xlu0 %1507
        %v1511 = vadd.f32 %v1491, %v1506
        %v1512 = vadd.f32 %v1492, %v1508
        %v1513 = vlaneseq
        %v1514 = vshrl.u32 %v1513, 7
        %v1515 = vsub.s32 2, %v1514
        %v1516 = vrot.slane %v881, %v1515
        %1518 = vrot.lane.b32.xlu0 %v1516, 52
        %v1519 = vpop.permute.xlu0 %1518
        %v1521 = vmul.f32 %v1471, %v1519
        %v1522 = vmul.f32 %v1472, %v1519
        %1525 = vrot.lane.b32.xlu0 %v1521, 76
        %v1526 = vpop.permute.xlu0 %1525
        %1527 = vrot.lane.b32.xlu0 %v1522, 76
        %v1528 = vpop.permute.xlu0 %1527
        %v1531 = vadd.f32 %v1511, %v1526
        %v1532 = vadd.f32 %v1512, %v1528
        %v1533 = vlaneseq
        %v1534 = vshrl.u32 %v1533, 7
        %v1535 = vsub.s32 3, %v1534
        %v1536 = vrot.slane %v881, %v1535
        %v1537 = vmul.f32 %v1459, %v1536
        %v1538 = vmul.f32 %v1460, %v1536
        %v1539 = vadd.f32 %v1531, %v1537
        %v1540 = vadd.f32 %v1532, %v1538
        %v1541 = vlaneseq
        %v1542 = vshrl.u32 %v1541, 7
        %v1543 = vsub.s32 4, %v1542
        %v1544 = vrot.slane %v881, %v1543
        %1546 = vrot.lane.b32.xlu0 %v1544, 12
        %v1547 = vpop.permute.xlu0 %1546
        %v1549 = vmul.f32 %v1471, %v1547
        %v1550 = vmul.f32 %v1472, %v1547
        %1553 = vrot.lane.b32.xlu0 %v1549, 116
        %v1554 = vpop.permute.xlu0 %1553
        %1555 = vrot.lane.b32.xlu0 %v1550, 116
        %v1556 = vpop.permute.xlu0 %1555
        %v1559 = vadd.f32 %v1539, %v1554
        %v1560 = vadd.f32 %v1540, %v1556
        %v1561 = vlaneseq
        %v1562 = vshrl.u32 %v1561, 7
        %v1563 = vsub.s32 5, %v1562
        %v1564 = vrot.slane %v881, %v1563
        %1566 = vrot.lane.b32.xlu0 %v1564, 24
        %v1567 = vpop.permute.xlu0 %1566
        %v1569 = vmul.f32 %v1471, %v1567
        %v1570 = vmul.f32 %v1472, %v1567
        %1573 = vrot.lane.b32.xlu0 %v1569, 104
        %v1574 = vpop.permute.xlu0 %1573
        %1575 = vrot.lane.b32.xlu0 %v1570, 104
        %v1576 = vpop.permute.xlu0 %1575
        %v1579 = vadd.f32 %v1559, %v1574
        %v1580 = vadd.f32 %v1560, %v1576
        %v1581 = vlaneseq
        %v1582 = vshrl.u32 %v1581, 7
        %v1583 = vsub.s32 6, %v1582
        %v1584 = vrot.slane %v881, %v1583
        %1586 = vrot.lane.b32.xlu0 %v1584, 36
        %v1587 = vpop.permute.xlu0 %1586
        %v1589 = vmul.f32 %v1471, %v1587
        %v1590 = vmul.f32 %v1472, %v1587
        %1593 = vrot.lane.b32.xlu0 %v1589, 92
        %v1594 = vpop.permute.xlu0 %1593
        %1595 = vrot.lane.b32.xlu0 %v1590, 92
        %v1596 = vpop.permute.xlu0 %1595
        %v1599 = vadd.f32 %v1579, %v1594
        %v1600 = vadd.f32 %v1580, %v1596
        %v1601 = vld [vmem:[#allocation3 + $0xf] sm:$0xff]
        %v1602 = vld [vmem:[#allocation3 + $0x17] sm:$0xff]
        %1603 = vrot.lane.b32.xlu0 %v1601, 64
        %v1604 = vpop.permute.xlu0 %1603
        %v1605 = vsel %vm361, %v1604, %v1601
        %1606 = vrot.lane.b32.xlu0 %v1602, 64
        %v1607 = vpop.permute.xlu0 %1606
        %v1608 = vsel %vm361, %v1607, %v1602
        %1609 = vrot.lane.b32.xlu0 %v1605, 64
        %v1610 = vpop.permute.xlu0 %1609
        %1611 = vrot.lane.b32.xlu0 %v1608, 64
        %v1612 = vpop.permute.xlu0 %1611
        %v1613 = vsel %vm361, %v1610, %v1601
        %v1614 = vsel %vm361, %v1612, %v1602
        %v1615 = vlaneseq
        %v1616 = vshrl.u32 %v1615, 7
        %v1617 = vsub.s32 0, %v1616
        %v1618 = vrot.slane %v882, %v1617
        %1620 = vrot.lane.b32.xlu0 %v1618, 28
        %v1621 = vpop.permute.xlu0 %1620
        %v1623 = vmul.f32 %v1613, %v1621
        %v1624 = vmul.f32 %v1614, %v1621
        %1627 = vrot.lane.b32.xlu0 %v1623, 100
        %v1628 = vpop.permute.xlu0 %1627
        %1629 = vrot.lane.b32.xlu0 %v1624, 100
        %v1630 = vpop.permute.xlu0 %1629
        %v1633 = vadd.f32 %v1599, %v1628
        %v1634 = vadd.f32 %v1600, %v1630
        %v1635 = vlaneseq
        %v1636 = vshrl.u32 %v1635, 7
        %v1637 = vsub.s32 1, %v1636
        %v1638 = vrot.slane %v882, %v1637
        %1640 = vrot.lane.b32.xlu0 %v1638, 40
        %v1641 = vpop.permute.xlu0 %1640
        %v1643 = vmul.f32 %v1613, %v1641
        %v1644 = vmul.f32 %v1614, %v1641
        %1647 = vrot.lane.b32.xlu0 %v1643, 88
        %v1648 = vpop.permute.xlu0 %1647
        %1649 = vrot.lane.b32.xlu0 %v1644, 88
        %v1650 = vpop.permute.xlu0 %1649
        %v1653 = vadd.f32 %v1633, %v1648
        %v1654 = vadd.f32 %v1634, %v1650
        %v1655 = vlaneseq
        %v1656 = vshrl.u32 %v1655, 7
        %v1657 = vsub.s32 2, %v1656
        %v1658 = vrot.slane %v882, %v1657
        %1660 = vrot.lane.b32.xlu0 %v1658, 52
        %v1661 = vpop.permute.xlu0 %1660
        %v1663 = vmul.f32 %v1613, %v1661
        %v1664 = vmul.f32 %v1614, %v1661
        %1667 = vrot.lane.b32.xlu0 %v1663, 76
        %v1668 = vpop.permute.xlu0 %1667
        %1669 = vrot.lane.b32.xlu0 %v1664, 76
        %v1670 = vpop.permute.xlu0 %1669
        %v1673 = vadd.f32 %v1653, %v1668
        %v1674 = vadd.f32 %v1654, %v1670
        %v1675 = vlaneseq
        %v1676 = vshrl.u32 %v1675, 7
        %v1677 = vsub.s32 3, %v1676
        %v1678 = vrot.slane %v882, %v1677
        %v1679 = vmul.f32 %v1601, %v1678
        %v1680 = vmul.f32 %v1602, %v1678
        %v1681 = vadd.f32 %v1673, %v1679
        %v1682 = vadd.f32 %v1674, %v1680
        %v1683 = vlaneseq
        %v1684 = vshrl.u32 %v1683, 7
        %v1685 = vsub.s32 4, %v1684
        %v1686 = vrot.slane %v882, %v1685
        %1688 = vrot.lane.b32.xlu0 %v1686, 12
        %v1689 = vpop.permute.xlu0 %1688
        %v1691 = vmul.f32 %v1613, %v1689
        %v1692 = vmul.f32 %v1614, %v1689
        %1695 = vrot.lane.b32.xlu0 %v1691, 116
        %v1696 = vpop.permute.xlu0 %1695
        %1697 = vrot.lane.b32.xlu0 %v1692, 116
        %v1698 = vpop.permute.xlu0 %1697
        %v1701 = vadd.f32 %v1681, %v1696
        %v1702 = vadd.f32 %v1682, %v1698
        %v1703 = vlaneseq
        %v1704 = vshrl.u32 %v1703, 7
        %v1705 = vsub.s32 5, %v1704
        %v1706 = vrot.slane %v882, %v1705
        %1708 = vrot.lane.b32.xlu0 %v1706, 24
        %v1709 = vpop.permute.xlu0 %1708
        %v1711 = vmul.f32 %v1613, %v1709
        %v1712 = vmul.f32 %v1614, %v1709
        %1715 = vrot.lane.b32.xlu0 %v1711, 104
        %v1716 = vpop.permute.xlu0 %1715
        %1717 = vrot.lane.b32.xlu0 %v1712, 104
        %v1718 = vpop.permute.xlu0 %1717
        %v1721 = vadd.f32 %v1701, %v1716
        %v1722 = vadd.f32 %v1702, %v1718
        %v1723 = vlaneseq
        %v1724 = vshrl.u32 %v1723, 7
        %v1725 = vsub.s32 6, %v1724
        %v1726 = vrot.slane %v882, %v1725
        %1728 = vrot.lane.b32.xlu0 %v1726, 36
        %v1729 = vpop.permute.xlu0 %1728
        %v1731 = vmul.f32 %v1613, %v1729
        %v1732 = vmul.f32 %v1614, %v1729
        %1735 = vrot.lane.b32.xlu0 %v1731, 92
        %v1736 = vpop.permute.xlu0 %1735
        %1737 = vrot.lane.b32.xlu0 %v1732, 92
        %v1738 = vpop.permute.xlu0 %1737
        %v1741 = vadd.f32 %v1721, %v1736
        %v1742 = vadd.f32 %v1722, %v1738
        %v1743 = vld [vmem:[#allocation3 + $0x12] sm:$0xff]
        %v1744 = vld [vmem:[#allocation3 + $0x1a] sm:$0xff]
        %1745 = vrot.lane.b32.xlu0 %v1743, 64
        %v1746 = vpop.permute.xlu0 %1745
        %v1747 = vsel %vm361, %v1746, %v1743
        %1748 = vrot.lane.b32.xlu0 %v1744, 64
        %v1749 = vpop.permute.xlu0 %1748
        %v1750 = vsel %vm361, %v1749, %v1744
        %1751 = vrot.lane.b32.xlu0 %v1747, 64
        %v1752 = vpop.permute.xlu0 %1751
        %1753 = vrot.lane.b32.xlu0 %v1750, 64
        %v1754 = vpop.permute.xlu0 %1753
        %v1755 = vsel %vm361, %v1752, %v1743
        %v1756 = vsel %vm361, %v1754, %v1744
        %v1757 = vlaneseq
        %v1758 = vshrl.u32 %v1757, 7
        %v1759 = vsub.s32 0, %v1758
        %v1760 = vrot.slane %v883, %v1759
        %1762 = vrot.lane.b32.xlu0 %v1760, 28
        %v1763 = vpop.permute.xlu0 %1762
        %v1765 = vmul.f32 %v1755, %v1763
        %v1766 = vmul.f32 %v1756, %v1763
        %1769 = vrot.lane.b32.xlu0 %v1765, 100
        %v1770 = vpop.permute.xlu0 %1769
        %1771 = vrot.lane.b32.xlu0 %v1766, 100
        %v1772 = vpop.permute.xlu0 %1771
        %v1775 = vadd.f32 %v1741, %v1770
        %v1776 = vadd.f32 %v1742, %v1772
        %v1777 = vlaneseq
        %v1778 = vshrl.u32 %v1777, 7
        %v1779 = vsub.s32 1, %v1778
        %v1780 = vrot.slane %v883, %v1779
        %1782 = vrot.lane.b32.xlu0 %v1780, 40
        %v1783 = vpop.permute.xlu0 %1782
        %v1785 = vmul.f32 %v1755, %v1783
        %v1786 = vmul.f32 %v1756, %v1783
        %1789 = vrot.lane.b32.xlu0 %v1785, 88
        %v1790 = vpop.permute.xlu0 %1789
        %1791 = vrot.lane.b32.xlu0 %v1786, 88
        %v1792 = vpop.permute.xlu0 %1791
        %v1795 = vadd.f32 %v1775, %v1790
        %v1796 = vadd.f32 %v1776, %v1792
        %v1797 = vlaneseq
        %v1798 = vshrl.u32 %v1797, 7
        %v1799 = vsub.s32 2, %v1798
        %v1800 = vrot.slane %v883, %v1799
        %1802 = vrot.lane.b32.xlu0 %v1800, 52
        %v1803 = vpop.permute.xlu0 %1802
        %v1805 = vmul.f32 %v1755, %v1803
        %v1806 = vmul.f32 %v1756, %v1803
        %1809 = vrot.lane.b32.xlu0 %v1805, 76
        %v1810 = vpop.permute.xlu0 %1809
        %1811 = vrot.lane.b32.xlu0 %v1806, 76
        %v1812 = vpop.permute.xlu0 %1811
        %v1815 = vadd.f32 %v1795, %v1810
        %v1816 = vadd.f32 %v1796, %v1812
        %v1817 = vlaneseq
        %v1818 = vshrl.u32 %v1817, 7
        %v1819 = vsub.s32 3, %v1818
        %v1820 = vrot.slane %v883, %v1819
        %v1821 = vmul.f32 %v1743, %v1820
        %v1822 = vmul.f32 %v1744, %v1820
        %v1823 = vadd.f32 %v1815, %v1821
        %v1824 = vadd.f32 %v1816, %v1822
        %v1825 = vlaneseq
        %v1826 = vshrl.u32 %v1825, 7
        %v1827 = vsub.s32 4, %v1826
        %v1828 = vrot.slane %v883, %v1827
        %1830 = vrot.lane.b32.xlu0 %v1828, 12
        %v1831 = vpop.permute.xlu0 %1830
        %v1833 = vmul.f32 %v1755, %v1831
        %v1834 = vmul.f32 %v1756, %v1831
        %1837 = vrot.lane.b32.xlu0 %v1833, 116
        %v1838 = vpop.permute.xlu0 %1837
        %1839 = vrot.lane.b32.xlu0 %v1834, 116
        %v1840 = vpop.permute.xlu0 %1839
        %v1843 = vadd.f32 %v1823, %v1838
        %v1844 = vadd.f32 %v1824, %v1840
        %v1845 = vlaneseq
        %v1846 = vshrl.u32 %v1845, 7
        %v1847 = vsub.s32 5, %v1846
        %v1848 = vrot.slane %v883, %v1847
        %1850 = vrot.lane.b32.xlu0 %v1848, 24
        %v1851 = vpop.permute.xlu0 %1850
        %v1853 = vmul.f32 %v1755, %v1851
        %v1854 = vmul.f32 %v1756, %v1851
        %1857 = vrot.lane.b32.xlu0 %v1853, 104
        %v1858 = vpop.permute.xlu0 %1857
        %1859 = vrot.lane.b32.xlu0 %v1854, 104
        %v1860 = vpop.permute.xlu0 %1859
        %v1863 = vadd.f32 %v1843, %v1858
        %v1864 = vadd.f32 %v1844, %v1860
        %v1865 = vlaneseq
        %v1866 = vshrl.u32 %v1865, 7
        %v1867 = vsub.s32 6, %v1866
        %v1868 = vrot.slane %v883, %v1867
        %1870 = vrot.lane.b32.xlu0 %v1868, 36
        %v1871 = vpop.permute.xlu0 %1870
        %v1873 = vmul.f32 %v1755, %v1871
        %v1874 = vmul.f32 %v1756, %v1871
        %1877 = vrot.lane.b32.xlu0 %v1873, 92
        %v1878 = vpop.permute.xlu0 %1877
        %1879 = vrot.lane.b32.xlu0 %v1874, 92
        %v1880 = vpop.permute.xlu0 %1879
        %v1883 = vadd.f32 %v1863, %v1878
        %v1884 = vadd.f32 %v1864, %v1880
        %v1885 = vld [vmem:[%s5] sm:$0x7f]
        %v1886 = vld [vmem:[%s6] sm:$0x1]
        %v1888 = vlaneseq
        %v1889 = vshrl.u32 %v1888, 7
        %v1890 = vsub.s32 0, %v1889
        %v1891 = vrot.slane %v1886, %v1890
        %1893 = vrot.lane.b32.xlu0 %v1883, 64
        %v1894 = vpop.permute.xlu0 %1893
        %v1895 = vsel %vm361, %v1894, %v1883
        %1896 = vrot.lane.b32.xlu0 %v1884, 64
        %v1897 = vpop.permute.xlu0 %1896
        %v1898 = vsel %vm361, %v1897, %v1884
        %1899 = vrot.lane.b32.xlu0 %v1895, 64
        %v1900 = vpop.permute.xlu0 %1899
        %1901 = vrot.lane.b32.xlu0 %v1898, 64
        %v1902 = vpop.permute.xlu0 %1901
        %v1903 = vsel %vm361, %v1900, %v1883
        %v1904 = vsel %vm361, %v1902, %v1884
        %v1905 = vlaneseq
        %v1906 = vshrl.u32 %v1905, 7
        %v1907 = vsub.s32 0, %v1906
        %v1908 = vrot.slane %v1885, %v1907
        %1910 = vrot.lane.b32.xlu0 %v1908, 61
        %v1911 = vpop.permute.xlu0 %1910
        %v1913 = vmul.f32 %v1903, %v1911
        %v1914 = vmul.f32 %v1904, %v1911
        %1917 = vrot.lane.b32.xlu0 %v1913, 67
        %v1918 = vpop.permute.xlu0 %1917
        %1919 = vrot.lane.b32.xlu0 %v1914, 67
        %v1920 = vpop.permute.xlu0 %1919
        %v1923 = vadd.f32 %v1891, %v1918
        %v1924 = vadd.f32 %v1891, %v1920
        %v1925 = vlaneseq
        %v1926 = vshrl.u32 %v1925, 7
        %v1927 = vsub.s32 1, %v1926
        %v1928 = vrot.slane %v1885, %v1927
        %1930 = vrot.lane.b32.xlu0 %v1928, 62
        %v1931 = vpop.permute.xlu0 %1930
        %v1933 = vmul.f32 %v1903, %v1931
        %v1934 = vmul.f32 %v1904, %v1931
        %1937 = vrot.lane.b32.xlu0 %v1933, 66
        %v1938 = vpop.permute.xlu0 %1937
        %1939 = vrot.lane.b32.xlu0 %v1934, 66
        %v1940 = vpop.permute.xlu0 %1939
        %v1943 = vadd.f32 %v1923, %v1938
        %v1944 = vadd.f32 %v1924, %v1940
        %v1945 = vlaneseq
        %v1946 = vshrl.u32 %v1945, 7
        %v1947 = vsub.s32 2, %v1946
        %v1948 = vrot.slane %v1885, %v1947
        %1950 = vrot.lane.b32.xlu0 %v1948, 63
        %v1951 = vpop.permute.xlu0 %1950
        %v1953 = vmul.f32 %v1903, %v1951
        %v1954 = vmul.f32 %v1904, %v1951
        %1957 = vrot.lane.b32.xlu0 %v1953, 65
        %v1958 = vpop.permute.xlu0 %1957
        %1959 = vrot.lane.b32.xlu0 %v1954, 65
        %v1960 = vpop.permute.xlu0 %1959
        %v1963 = vadd.f32 %v1943, %v1958
        %v1964 = vadd.f32 %v1944, %v1960
        %v1965 = vlaneseq
        %v1966 = vshrl.u32 %v1965, 7
        %v1967 = vsub.s32 3, %v1966
        %v1968 = vrot.slane %v1885, %v1967
        %v1969 = vmul.f32 %v1883, %v1968
        %v1970 = vmul.f32 %v1884, %v1968
        %v1971 = vadd.f32 %v1963, %v1969
        %v1972 = vadd.f32 %v1964, %v1970
        %v1973 = vlaneseq
        %v1974 = vshrl.u32 %v1973, 7
        %v1975 = vsub.s32 4, %v1974
        %v1976 = vrot.slane %v1885, %v1975
        %1978 = vrot.lane.b32.xlu0 %v1976, 1
        %v1979 = vpop.permute.xlu0 %1978
        %v1981 = vmul.f32 %v1903, %v1979
        %v1982 = vmul.f32 %v1904, %v1979
        %1985 = vrot.lane.b32.xlu0 %v1981, 127
        %v1986 = vpop.permute.xlu0 %1985
        %1987 = vrot.lane.b32.xlu0 %v1982, 127
        %v1988 = vpop.permute.xlu0 %1987
        %v1991 = vadd.f32 %v1971, %v1986
        %v1992 = vadd.f32 %v1972, %v1988
        %v1993 = vlaneseq
        %v1994 = vshrl.u32 %v1993, 7
        %v1995 = vsub.s32 5, %v1994
        %v1996 = vrot.slane %v1885, %v1995
        %1998 = vrot.lane.b32.xlu0 %v1996, 2
        %v1999 = vpop.permute.xlu0 %1998
        %v2001 = vmul.f32 %v1903, %v1999
        %v2002 = vmul.f32 %v1904, %v1999
        %2005 = vrot.lane.b32.xlu0 %v2001, 126
        %v2006 = vpop.permute.xlu0 %2005
        %2007 = vrot.lane.b32.xlu0 %v2002, 126
        %v2008 = vpop.permute.xlu0 %2007
        %v2011 = vadd.f32 %v1991, %v2006
        %v2012 = vadd.f32 %v1992, %v2008
        %v2013 = vlaneseq
        %v2014 = vshrl.u32 %v2013, 7
        %v2015 = vsub.s32 6, %v2014
        %v2016 = vrot.slane %v1885, %v2015
        %2018 = vrot.lane.b32.xlu0 %v2016, 3
        %v2019 = vpop.permute.xlu0 %2018
        %v2021 = vmul.f32 %v1903, %v2019
        %v2022 = vmul.f32 %v1904, %v2019
        %2025 = vrot.lane.b32.xlu0 %v2021, 125
        %v2026 = vpop.permute.xlu0 %2025
        %2027 = vrot.lane.b32.xlu0 %v2022, 125
        %v2028 = vpop.permute.xlu0 %2027
        %v2031 = vadd.f32 %v2011, %v2026
        %v2032 = vadd.f32 %v2012, %v2028
        %v2033 = vld [vmem:[%s296] sm:$0xff]
        %v2034 = vld [vmem:[%s296 + $0x8] sm:$0xff]
        %v2035 = vmul.f32 %v2033, %v2031
        %v2036 = vmul.f32 %v2034, %v2032
        %2037 = vst.msk [vmem:[%s338] sm:$0xff] %vm344, %v2035
        %2038 = vst.msk [vmem:[%s338 + $0x8] sm:$0xff] %vm344, %v2036
        %s2039 = sand.u32 %s186, 1
        %s2040 = scalar_lea.sflag [#allocation6], %s2039
        %s2041 = sand.u32 %s186, 1
        %s2042 = smul.addr %s2041, 16
        %s2043 = scalar_lea.vmem [#allocation12], %s2042
        // Predicated region
        $region65: #{tpu_custom_call.1} parent=47 // pred_check
          %p2044 = pneg %p196
        $region66: #{tpu_custom_call.1} parent=47 // pred_check_branch
          %2046 = sbr.rel (%p2044) target = $region68
        $region67: #{tpu_custom_call.1} parent=47 // pred_region
          %s2048 = ssub.s32 256, 256
          %2049 = vsyncadd %s2040, %s2048
          %s2050 = smul.addr %s26, 2
          %s2051 = smul.addr %s2050, 128
          %s2052 = scalar_lea.hbm %s7, %s2051
          %s2053 = sshll.u32 %s2043, 4
          %s2054 = int_to_ptr.vmem [resolvable:$true] %s2053
          %2059 = dma.vmem_to_hbm [thread:$0]  %s2054, 256, %s2052, %s2040, 128, 128, 8
        $region68: #{tpu_custom_call.1} parent=47 // pred_fallthru
          _
      $region48: #{tpu_custom_call.1} parent=5 // pred_fallthru
        _
      %p2060 = scmp.le.s32.totalorder 2, %s21
      // Predicated region
      $region69: #{tpu_custom_call.1} parent=5 // pred_check
        %p2061 = pneg %p2060
      $region70: #{tpu_custom_call.1} parent=5 // pred_check_branch
        %2063 = sbr.rel (%p2061) target = $region72
      $region71: #{tpu_custom_call.1} parent=5 // pred_region
        %s2064 = ssub.s32 %s21, 2
        // Predicated region
        $region73: #{tpu_custom_call.1} parent=71 // pred_check
          %p2065 = pneg %p202
        $region74: #{tpu_custom_call.1} parent=71 // pred_check_branch
          %2067 = sbr.rel (%p2065) target = $region76
        $region75: #{tpu_custom_call.1} parent=71 // pred_region
          %s2068 = sand.u32 %s187, 1
          %s2069 = scalar_lea.sflag [#allocation6], %s2068
          %s2070 = sand.u32 %s187, 1
          %s2071 = smul.addr %s2070, 16
          %s2072 = scalar_lea.vmem [#allocation12], %s2071
          %2073 = dma.done %s2069, 256
        $region76: #{tpu_custom_call.1} parent=71 // pred_fallthru
          _
      $region72: #{tpu_custom_call.1} parent=5 // pred_fallthru
        _
    $region6: #{tpu_custom_call.1} parent=1 // loop_footer
      %s25 = sadd.s32 1, %s21
    $region7: #{tpu_custom_call.1} parent=1 // loop_footer_branch
      %20 = sbr.rel target = $region3
    $region8: #{tpu_custom_call.1} parent=1 // loop_exit
      _
    %2074 = vsyncpa [#allocation5], 1
    %s2075 = scalar_lea.sflag [#allocation5], 1
    %2076 = vsyncpa %s2075, 1
    %2077 = vsyncpa [#allocation8], 1
    %2078 = vsyncpa [#allocation11], 1
    %2079 = vsyncpa [#allocation6], 1
    %s2080 = scalar_lea.sflag [#allocation6], 1
    %2081 = vsyncpa %s2080, 1

</llo_original>
